<compile_context>
chip_gen: v5e
topology: v5e:2x2
jax: 0.10.0
libtpu: 0.0.40
codegen_flags: <defaults>
</compile_context>

<pallas_src>
import functools

import jax
import jax.numpy as jnp
from jax.experimental import pallas as pl
from jax.experimental.pallas import tpu as pltpu


# ----------------------------------------------------------------------------
# Pallas kernels
# ----------------------------------------------------------------------------

def _conv_bn_relu_kernel(a_ref, w_ref, shift_ref, o_ref):
    """o = relu(A @ W + shift); A/W bf16, f32 MXU accumulate, BN pre-folded into W/shift."""
    acc = jnp.dot(a_ref[...], w_ref[...], preferred_element_type=jnp.float32)
    o_ref[...] = jnp.maximum(acc + shift_ref[...], 0.0).astype(o_ref.dtype)


def _conv_bn_relu_pool_kernel(a_ref, w_ref, shift_ref, feat_ref, pool_ref, vmax_ref,
                              *, rows, img_w):
    """Fused conv(3x3)+BN+ReLU with a 2x2 / stride-2 max-pool of the same tile.

    a_ref    : (rows*img_w, K)               bf16 im2col rows for `rows` full image rows
                                             (raster order, one batch element per tile)
    feat_ref : (rows*img_w, C)               f32 conv features       (module output #2)
    pool_ref : ((rows//2)*(img_w//2), C)     f32 pooled features     (module output #1)
    vmax_ref : ((rows//2)*img_w, C)          f32 scratch: vertical (row-pair) max
    """
    y = jnp.dot(a_ref[...], w_ref[...], preferred_element_type=jnp.float32)
    y = jnp.maximum(y + shift_ref[...], 0.0)
    feat_ref[...] = y.astype(feat_ref.dtype)

    # 1) vertical max over adjacent image rows (contiguous img_w-row groups of y).
    for t in range(rows // 2):
        top = y[(2 * t) * img_w:(2 * t + 1) * img_w, :]
        bot = y[(2 * t + 1) * img_w:(2 * t + 2) * img_w, :]
        vmax_ref[t * img_w:(t + 1) * img_w, :] = jnp.maximum(top, bot)

    # 2) horizontal max over adjacent image columns = even/odd sublanes of vmax.
    n_pool = (rows // 2) * (img_w // 2)
    even = vmax_ref[pl.ds(0, n_pool, stride=2), :]
    odd = vmax_ref[pl.ds(1, n_pool, stride=2), :]
    pool_ref[...] = jnp.maximum(even, odd)


# ----------------------------------------------------------------------------
# JAX-side glue: im2col, BN folding, tile selection
# ----------------------------------------------------------------------------

def _im2col_3x3(x_nhwc):
    """im2col for a 3x3 / pad=1 / stride=1 conv; rows in (n, i, j) raster order."""
    n, h, w, c = x_nhwc.shape
    xp = jnp.pad(x_nhwc, ((0, 0), (1, 1), (1, 1), (0, 0)))
    taps = [xp[:, di:di + h, dj:dj + w, :] for di in range(3) for dj in range(3)]
    return jnp.concatenate(taps, axis=-1).reshape(n * h * w, 9 * c)


def fold_bn(conv, bn, eps=1e-5):
    """Fold inference-mode BatchNorm into the conv weight + a single shift vector."""
    scale = bn["gamma"] * jax.lax.rsqrt(bn["var"] + eps)
    w = conv["w"] * scale                                   # (3,3,cin,cout) * (cout,)
    shift = (conv["b"] - bn["mean"]) * scale + bn["beta"]
    return w, shift


def _pick_tile_rows(total_rows, max_tile=512):
    """Largest row tile <= max_tile that divides total_rows and leaves >= 2 programs."""
    for tm in (512, 256, 128, 64, 32, 16):
        if tm <= max_tile and total_rows % tm == 0 and total_rows // tm >= 2:
            return tm
    return total_rows


def _pick_row_tile(n, h, w, max_rows=512):
    """Largest even divisor `th` of h with th*w rows <= max_rows and >= 2 grid programs."""
    for th in range(h, 1, -2):
        if h % th == 0 and th * w <= max_rows and (n * h) // th >= 2:
            return th
    return 2


# ----------------------------------------------------------------------------
# ConvBlock / EncoderBlock wrappers
# ----------------------------------------------------------------------------

def conv3x3_bn_relu(x_nhwc, w, shift, out_dtype=jnp.bfloat16):
    """ConvBlock: 3x3 conv (pad=1, stride=1) + folded BN + ReLU as one Pallas matmul."""
    n, h, wd, cin = x_nhwc.shape
    cout = w.shape[-1]
    a = _im2col_3x3(x_nhwc).astype(jnp.bfloat16)            # (n*h*wd, 9*cin)
    wmat = w.reshape(9 * cin, cout).astype(jnp.bfloat16)
    shiftv = shift.reshape(1, cout).astype(jnp.float32)
    m, k = a.shape
    tm = _pick_tile_rows(m)
    assert m % tm == 0 and tm % 8 == 0, (m, tm)

    out = pl.pallas_call(
        _conv_bn_relu_kernel,
        out_shape=jax.ShapeDtypeStruct((m, cout), out_dtype),
        grid=(m // tm,),
        in_specs=[
            pl.BlockSpec((tm, k), lambda i: (i, 0)),
            pl.BlockSpec((k, cout), lambda i: (0, 0)),
            pl.BlockSpec((1, cout), lambda i: (0, 0)),
        ],
        out_specs=pl.BlockSpec((tm, cout), lambda i: (i, 0)),
        compiler_params=pltpu.CompilerParams(dimension_semantics=("parallel",)),
    )(a, wmat, shiftv)
    return out.reshape(n, h, wd, cout)


def conv3x3_bn_relu_maxpool2(x_nhwc, w, shift):
    """ConvBlock + MaxPool2d(2,2) fused into one Pallas kernel.

    Returns (features, pooled) in NHWC float32.
    """
    n, h, wd, cin = x_nhwc.shape
    cout = w.shape[-1]
    assert h % 2 == 0 and wd % 2 == 0, (h, wd)

    a = _im2col_3x3(x_nhwc).astype(jnp.bfloat16)            # rows in (n, i, j) order
    wmat = w.reshape(9 * cin, cout).astype(jnp.bfloat16)
    shiftv = shift.reshape(1, cout).astype(jnp.float32)
    k = a.shape[1]

    th = _pick_row_tile(n, h, wd)                           # image rows per grid step
    assert h % th == 0 and th % 2 == 0, (h, th)
    m_tile = th * wd                                        # conv rows per tile
    p_tile = (th // 2) * (wd // 2)                          # pooled rows per tile
    assert m_tile % 8 == 0 and p_tile % 8 == 0, (m_tile, p_tile)
    grid = (n * h // th,)

    feat, pooled = pl.pallas_call(
        functools.partial(_conv_bn_relu_pool_kernel, rows=th, img_w=wd),
        out_shape=(jax.ShapeDtypeStruct((n * h * wd, cout), jnp.float32),
                   jax.ShapeDtypeStruct((n * (h // 2) * (wd // 2), cout), jnp.float32)),
        grid=grid,
        in_specs=[
            pl.BlockSpec((m_tile, k), lambda g: (g, 0)),
            pl.BlockSpec((k, cout), lambda g: (0, 0)),
            pl.BlockSpec((1, cout), lambda g: (0, 0)),
        ],
        out_specs=(pl.BlockSpec((m_tile, cout), lambda g: (g, 0)),
                   pl.BlockSpec((p_tile, cout), lambda g: (g, 0))),
        scratch_shapes=[pltpu.VMEM(((th // 2) * wd, cout), jnp.float32)],
        compiler_params=pltpu.CompilerParams(dimension_semantics=("parallel",)),
    )(a, wmat, shiftv)

    return (feat.reshape(n, h, wd, cout),
            pooled.reshape(n, h // 2, wd // 2, cout))


def encoder_block_forward(x_nchw, params):
    """EncoderBlock.forward: returns (pooled, features) in NCHW, like the PyTorch module."""
    x = jnp.transpose(x_nchw, (0, 2, 3, 1)).astype(jnp.float32)     # NCHW -> NHWC
    w1, s1 = fold_bn(params["conv1"], params["bn1"])
    w2, s2 = fold_bn(params["conv2"], params["bn2"])
    h1 = conv3x3_bn_relu(x, w1, s1)                                 # ConvBlock 1 (bf16 out)
    feat, pooled = conv3x3_bn_relu_maxpool2(h1, w2, s2)             # ConvBlock 2 + pool
    return (jnp.transpose(pooled, (0, 3, 1, 2)),
            jnp.transpose(feat, (0, 3, 1, 2)))


# ----------------------------------------------------------------------------
# Deterministic parameter init (no checkpoint)
# ----------------------------------------------------------------------------

def init_encoder_params(key, in_channels, out_channels):
    ks = jax.random.split(key, 4)

    def conv(k, cin, cout):
        kw, kb = jax.random.split(k)
        std = 1.0 / (3.0 * (cin ** 0.5))                    # ~ 1/sqrt(9*cin)
        return {"w": std * jax.random.normal(kw, (3, 3, cin, cout), jnp.float32),
                "b": 0.02 * jax.random.normal(kb, (cout,), jnp.float32)}

    def bn(k, c):
        kg, kb, km, kv = jax.random.split(k, 4)
        return {"gamma": 1.0 + 0.1 * jax.random.normal(kg, (c,), jnp.float32),
                "beta": 0.1 * jax.random.normal(kb, (c,), jnp.float32),
                "mean": 0.1 * jax.random.normal(km, (c,), jnp.float32),
                "var": 0.9 + 0.2 * jax.random.uniform(kv, (c,), jnp.float32)}

    return {"conv1": conv(ks[0], in_channels, out_channels),
            "bn1": bn(ks[1], out_channels),
            "conv2": conv(ks[2], out_channels, out_channels),
            "bn2": bn(ks[3], out_channels)}


if __name__ == "__main__":
    key = jax.random.PRNGKey(0)
    kp, kx = jax.random.split(key)
    in_channels, out_channels = 4, 128
    params = init_encoder_params(kp, in_channels, out_channels)
    x = jax.random.normal(kx, (2, in_channels, 16, 16), dtype=jnp.float32)   # NCHW

    fwd = jax.jit(encoder_block_forward)
    pooled, features = fwd(x, params)
    pooled, features = jax.block_until_ready((pooled, features))

    assert features.shape == (2, out_channels, 16, 16), features.shape
    assert pooled.shape == (2, out_channels, 8, 8), pooled.shape
    assert bool(jnp.all(jnp.isfinite(features))) and bool(jnp.all(jnp.isfinite(pooled)))
    assert bool(jnp.all(features >= 0.0))                   # ReLU output
    # fused in-kernel max-pool must match a 2x2/stride-2 pool of the features output
    ref_pool = jnp.max(features.reshape(2, out_channels, 8, 2, 8, 2), axis=(3, 5))
    assert bool(jnp.allclose(ref_pool, pooled)), float(jnp.max(jnp.abs(ref_pool - pooled)))
    print("KERNEL_OK")
</pallas_src>

<mosaic_0001>
module attributes {stable_mosaic.version = 11 : i64} {
  func.func @_conv_bn_relu_kernel(%arg0: i32, %arg1: memref<256x36xbf16, #tpu.memory_space<vmem>>, %arg2: memref<36x128xbf16, #tpu.memory_space<vmem>>, %arg3: memref<1x128xf32, #tpu.memory_space<vmem>>, %arg4: memref<256x128xbf16, #tpu.memory_space<vmem>>) attributes {dimension_semantics = [#tpu.dimension_semantics<parallel>], iteration_bounds = array<i64: 2>, scalar_prefetch = 0 : i64, scratch_operands = 0 : i64, tpu.core_type = #tpu.core_type<tc>, window_params = [{transform_indices = @transform_0, window_bounds = array<i64: 256, 36>}, {pipeline_mode = #tpu.pipeline_mode<synchronous>, transform_indices = @transform_1, window_bounds = array<i64: 36, 128>}, {pipeline_mode = #tpu.pipeline_mode<synchronous>, transform_indices = @transform_2, window_bounds = array<i64: 1, 128>}, {transform_indices = @transform_3, window_bounds = array<i64: 256, 128>}]} {
    %c0 = arith.constant 0 : index
    %c0_0 = arith.constant 0 : index
    %0 = vector.load %arg1[%c0, %c0_0] : memref<256x36xbf16, #tpu.memory_space<vmem>>, vector<256x36xbf16>
    %c0_1 = arith.constant 0 : index
    %c0_2 = arith.constant 0 : index
    %1 = vector.load %arg2[%c0_1, %c0_2] : memref<36x128xbf16, #tpu.memory_space<vmem>>, vector<36x128xbf16>
    %cst = arith.constant dense<0.000000e+00> : vector<256x128xf32>
    %2 = tpu.matmul %0, %1, %cst {dimension_numbers = #tpu.dot_dimension_numbers<[1], [0], [0], [1], [0, 0, 1, 1], [], []>} : vector<256x36xbf16>, vector<36x128xbf16>, vector<256x128xf32> -> vector<256x128xf32>
    %c0_3 = arith.constant 0 : index
    %c0_4 = arith.constant 0 : index
    %3 = vector.load %arg3[%c0_3, %c0_4] : memref<1x128xf32, #tpu.memory_space<vmem>>, vector<1x128xf32>
    %4 = vector.broadcast %3 : vector<1x128xf32> to vector<256x128xf32>
    %5 = arith.addf %2, %4 : vector<256x128xf32>
    %cst_5 = arith.constant 0.000000e+00 : f32
    %6 = vector.broadcast %cst_5 : f32 to vector<256x128xf32>
    %7 = arith.maximumf %5, %6 : vector<256x128xf32>
    %8 = arith.truncf %7 : vector<256x128xf32> to vector<256x128xbf16>
    %c0_6 = arith.constant 0 : index
    %c0_7 = arith.constant 0 : index
    %9 = vector.load %arg4[%c0_6, %c0_7] : memref<256x128xbf16, #tpu.memory_space<vmem>>, vector<256x128xbf16>
    tpu.vector_store %arg4[%c0_6, %c0_7], %8 {strides = array<i32>} : memref<256x128xbf16, #tpu.memory_space<vmem>>, vector<256x128xbf16>,
    return
  }
  func.func @transform_0(%arg0: i32) -> (i32, i32) {
    %c0_i32 = arith.constant 0 : i32
    %c0_i32_0 = arith.constant 0 : i32
    return %arg0, %c0_i32 : i32, i32
  }
  func.func @transform_1(%arg0: i32) -> (i32, i32) {
    %c0_i32 = arith.constant 0 : i32
    %c0_i32_0 = arith.constant 0 : i32
    %c0_i32_1 = arith.constant 0 : i32
    return %c0_i32, %c0_i32_0 : i32, i32
  }
  func.func @transform_2(%arg0: i32) -> (i32, i32) {
    %c0_i32 = arith.constant 0 : i32
    %c0_i32_0 = arith.constant 0 : i32
    %c0_i32_1 = arith.constant 0 : i32
    return %c0_i32, %c0_i32_0 : i32, i32
  }
  func.func @transform_3(%arg0: i32) -> (i32, i32) {
    %c0_i32 = arith.constant 0 : i32
    %c0_i32_0 = arith.constant 0 : i32
    return %arg0, %c0_i32 : i32, i32
  }
}

module attributes {stable_mosaic.version = 11 : i64} {
  func.func @_conv_bn_relu_pool_kernel(%arg0: i32, %arg1: memref<256x1152xbf16, #tpu.memory_space<vmem>>, %arg2: memref<1152x128xbf16, #tpu.memory_space<vmem>>, %arg3: memref<1x128xf32, #tpu.memory_space<vmem>>, %arg4: memref<256x128xf32, #tpu.memory_space<vmem>>, %arg5: memref<64x128xf32, #tpu.memory_space<vmem>>, %arg6: memref<128x128xf32, #tpu.memory_space<vmem>>) attributes {dimension_semantics = [#tpu.dimension_semantics<parallel>], iteration_bounds = array<i64: 2>, scalar_prefetch = 0 : i64, scratch_operands = 1 : i64, tpu.core_type = #tpu.core_type<tc>, window_params = [{transform_indices = @transform_0, window_bounds = array<i64: 256, 1152>}, {pipeline_mode = #tpu.pipeline_mode<synchronous>, transform_indices = @transform_1, window_bounds = array<i64: 1152, 128>}, {pipeline_mode = #tpu.pipeline_mode<synchronous>, transform_indices = @transform_2, window_bounds = array<i64: 1, 128>}, {transform_indices = @transform_3, window_bounds = array<i64: 256, 128>}, {transform_indices = @transform_4, window_bounds = array<i64: 64, 128>}]} {
    %c0 = arith.constant 0 : index
    %c0_0 = arith.constant 0 : index
    %0 = vector.load %arg1[%c0, %c0_0] : memref<256x1152xbf16, #tpu.memory_space<vmem>>, vector<256x1152xbf16>
    %c0_1 = arith.constant 0 : index
    %c0_2 = arith.constant 0 : index
    %1 = vector.load %arg2[%c0_1, %c0_2] : memref<1152x128xbf16, #tpu.memory_space<vmem>>, vector<1152x128xbf16>
    %cst = arith.constant dense<0.000000e+00> : vector<256x128xf32>
    %2 = tpu.matmul %0, %1, %cst {dimension_numbers = #tpu.dot_dimension_numbers<[1], [0], [0], [1], [0, 0, 1, 1], [], []>} : vector<256x1152xbf16>, vector<1152x128xbf16>, vector<256x128xf32> -> vector<256x128xf32>
    %c0_3 = arith.constant 0 : index
    %c0_4 = arith.constant 0 : index
    %3 = vector.load %arg3[%c0_3, %c0_4] : memref<1x128xf32, #tpu.memory_space<vmem>>, vector<1x128xf32>
    %4 = vector.broadcast %3 : vector<1x128xf32> to vector<256x128xf32>
    %5 = arith.addf %2, %4 : vector<256x128xf32>
    %cst_5 = arith.constant 0.000000e+00 : f32
    %6 = vector.broadcast %cst_5 : f32 to vector<256x128xf32>
    %7 = arith.maximumf %5, %6 : vector<256x128xf32>
    %c0_6 = arith.constant 0 : index
    %c0_7 = arith.constant 0 : index
    %8 = vector.load %arg4[%c0_6, %c0_7] : memref<256x128xf32, #tpu.memory_space<vmem>>, vector<256x128xf32>
    tpu.vector_store %arg4[%c0_6, %c0_7], %7 {strides = array<i32>} : memref<256x128xf32, #tpu.memory_space<vmem>>, vector<256x128xf32>,
    %9 = vector.extract_strided_slice %7 {offsets = [0, 0], sizes = [16, 128], strides = [1, 1]} : vector<256x128xf32> to vector<16x128xf32>
    %10 = vector.extract_strided_slice %7 {offsets = [16, 0], sizes = [16, 128], strides = [1, 1]} : vector<256x128xf32> to vector<16x128xf32>
    %11 = arith.maximumf %9, %10 : vector<16x128xf32>
    %c0_8 = arith.constant 0 : index
    %c0_9 = arith.constant 0 : index
    %12 = vector.load %arg6[%c0_8, %c0_9] : memref<128x128xf32, #tpu.memory_space<vmem>>, vector<16x128xf32>
    tpu.vector_store %arg6[%c0_8, %c0_9], %11 {strides = array<i32>} : memref<128x128xf32, #tpu.memory_space<vmem>>, vector<16x128xf32>,
    %13 = vector.extract_strided_slice %7 {offsets = [32, 0], sizes = [16, 128], strides = [1, 1]} : vector<256x128xf32> to vector<16x128xf32>
    %14 = vector.extract_strided_slice %7 {offsets = [48, 0], sizes = [16, 128], strides = [1, 1]} : vector<256x128xf32> to vector<16x128xf32>
    %15 = arith.maximumf %13, %14 : vector<16x128xf32>
    %c16 = arith.constant 16 : index
    %c0_10 = arith.constant 0 : index
    %16 = vector.load %arg6[%c16, %c0_10] : memref<128x128xf32, #tpu.memory_space<vmem>>, vector<16x128xf32>
    tpu.vector_store %arg6[%c16, %c0_10], %15 {strides = array<i32>} : memref<128x128xf32, #tpu.memory_space<vmem>>, vector<16x128xf32>,
    %17 = vector.extract_strided_slice %7 {offsets = [64, 0], sizes = [16, 128], strides = [1, 1]} : vector<256x128xf32> to vector<16x128xf32>
    %18 = vector.extract_strided_slice %7 {offsets = [80, 0], sizes = [16, 128], strides = [1, 1]} : vector<256x128xf32> to vector<16x128xf32>
    %19 = arith.maximumf %17, %18 : vector<16x128xf32>
    %c32 = arith.constant 32 : index
    %c0_11 = arith.constant 0 : index
    %20 = vector.load %arg6[%c32, %c0_11] : memref<128x128xf32, #tpu.memory_space<vmem>>, vector<16x128xf32>
    tpu.vector_store %arg6[%c32, %c0_11], %19 {strides = array<i32>} : memref<128x128xf32, #tpu.memory_space<vmem>>, vector<16x128xf32>,
    %21 = vector.extract_strided_slice %7 {offsets = [96, 0], sizes = [16, 128], strides = [1, 1]} : vector<256x128xf32> to vector<16x128xf32>
    %22 = vector.extract_strided_slice %7 {offsets = [112, 0], sizes = [16, 128], strides = [1, 1]} : vector<256x128xf32> to vector<16x128xf32>
    %23 = arith.maximumf %21, %22 : vector<16x128xf32>
    %c48 = arith.constant 48 : index
    %c0_12 = arith.constant 0 : index
    %24 = vector.load %arg6[%c48, %c0_12] : memref<128x128xf32, #tpu.memory_space<vmem>>, vector<16x128xf32>
    tpu.vector_store %arg6[%c48, %c0_12], %23 {strides = array<i32>} : memref<128x128xf32, #tpu.memory_space<vmem>>, vector<16x128xf32>,
    %25 = vector.extract_strided_slice %7 {offsets = [128, 0], sizes = [16, 128], strides = [1, 1]} : vector<256x128xf32> to vector<16x128xf32>
    %26 = vector.extract_strided_slice %7 {offsets = [144, 0], sizes = [16, 128], strides = [1, 1]} : vector<256x128xf32> to vector<16x128xf32>
    %27 = arith.maximumf %25, %26 : vector<16x128xf32>
    %c64 = arith.constant 64 : index
    %c0_13 = arith.constant 0 : index
    %28 = vector.load %arg6[%c64, %c0_13] : memref<128x128xf32, #tpu.memory_space<vmem>>, vector<16x128xf32>
    tpu.vector_store %arg6[%c64, %c0_13], %27 {strides = array<i32>} : memref<128x128xf32, #tpu.memory_space<vmem>>, vector<16x128xf32>,
    %29 = vector.extract_strided_slice %7 {offsets = [160, 0], sizes = [16, 128], strides = [1, 1]} : vector<256x128xf32> to vector<16x128xf32>
    %30 = vector.extract_strided_slice %7 {offsets = [176, 0], sizes = [16, 128], strides = [1, 1]} : vector<256x128xf32> to vector<16x128xf32>
    %31 = arith.maximumf %29, %30 : vector<16x128xf32>
    %c80 = arith.constant 80 : index
    %c0_14 = arith.constant 0 : index
    %32 = vector.load %arg6[%c80, %c0_14] : memref<128x128xf32, #tpu.memory_space<vmem>>, vector<16x128xf32>
    tpu.vector_store %arg6[%c80, %c0_14], %31 {strides = array<i32>} : memref<128x128xf32, #tpu.memory_space<vmem>>, vector<16x128xf32>,
    %33 = vector.extract_strided_slice %7 {offsets = [192, 0], sizes = [16, 128], strides = [1, 1]} : vector<256x128xf32> to vector<16x128xf32>
    %34 = vector.extract_strided_slice %7 {offsets = [208, 0], sizes = [16, 128], strides = [1, 1]} : vector<256x128xf32> to vector<16x128xf32>
    %35 = arith.maximumf %33, %34 : vector<16x128xf32>
    %c96 = arith.constant 96 : index
    %c0_15 = arith.constant 0 : index
    %36 = vector.load %arg6[%c96, %c0_15] : memref<128x128xf32, #tpu.memory_space<vmem>>, vector<16x128xf32>
    tpu.vector_store %arg6[%c96, %c0_15], %35 {strides = array<i32>} : memref<128x128xf32, #tpu.memory_space<vmem>>, vector<16x128xf32>,
    %37 = vector.extract_strided_slice %7 {offsets = [224, 0], sizes = [16, 128], strides = [1, 1]} : vector<256x128xf32> to vector<16x128xf32>
    %38 = vector.extract_strided_slice %7 {offsets = [240, 0], sizes = [16, 128], strides = [1, 1]} : vector<256x128xf32> to vector<16x128xf32>
    %39 = arith.maximumf %37, %38 : vector<16x128xf32>
    %c112 = arith.constant 112 : index
    %c0_16 = arith.constant 0 : index
    %40 = vector.load %arg6[%c112, %c0_16] : memref<128x128xf32, #tpu.memory_space<vmem>>, vector<16x128xf32>
    tpu.vector_store %arg6[%c112, %c0_16], %39 {strides = array<i32>} : memref<128x128xf32, #tpu.memory_space<vmem>>, vector<16x128xf32>,
    %c0_17 = arith.constant 0 : index
    %c0_18 = arith.constant 0 : index
    %41 = tpu.strided_load %arg6[%c0_17, %c0_18] {strides = array<i32: 2, 1>} : memref<128x128xf32, #tpu.memory_space<vmem>>, vector<64x128xf32>
    %c1 = arith.constant 1 : index
    %c0_19 = arith.constant 0 : index
    %42 = tpu.strided_load %arg6[%c1, %c0_19] {strides = array<i32: 2, 1>} : memref<128x128xf32, #tpu.memory_space<vmem>>, vector<64x128xf32>
    %43 = arith.maximumf %41, %42 : vector<64x128xf32>
    %c0_20 = arith.constant 0 : index
    %c0_21 = arith.constant 0 : index
    %44 = vector.load %arg5[%c0_20, %c0_21] : memref<64x128xf32, #tpu.memory_space<vmem>>, vector<64x128xf32>
    tpu.vector_store %arg5[%c0_20, %c0_21], %43 {strides = array<i32>} : memref<64x128xf32, #tpu.memory_space<vmem>>, vector<64x128xf32>,
    return
  }
  func.func @transform_0(%arg0: i32) -> (i32, i32) {
    %c0_i32 = arith.constant 0 : i32
    %c0_i32_0 = arith.constant 0 : i32
    return %arg0, %c0_i32 : i32, i32
  }
  func.func @transform_1(%arg0: i32) -> (i32, i32) {
    %c0_i32 = arith.constant 0 : i32
    %c0_i32_0 = arith.constant 0 : i32
    %c0_i32_1 = arith.constant 0 : i32
    return %c0_i32, %c0_i32_0 : i32, i32
  }
  func.func @transform_2(%arg0: i32) -> (i32, i32) {
    %c0_i32 = arith.constant 0 : i32
    %c0_i32_0 = arith.constant 0 : i32
    %c0_i32_1 = arith.constant 0 : i32
    return %c0_i32, %c0_i32_0 : i32, i32
  }
  func.func @transform_3(%arg0: i32) -> (i32, i32) {
    %c0_i32 = arith.constant 0 : i32
    %c0_i32_0 = arith.constant 0 : i32
    return %arg0, %c0_i32 : i32, i32
  }
  func.func @transform_4(%arg0: i32) -> (i32, i32) {
    %c0_i32 = arith.constant 0 : i32
    %c0_i32_0 = arith.constant 0 : i32
    return %arg0, %c0_i32 : i32, i32
  }
}

</mosaic_0001>

<llo_original>
// kernel: encoder_block_forward.2
$region0: #{encoder_block_forward.2}
  #allocation0 [shape = 'u32[]', space=smem, size = 0x4, offset = 0x4, fixed_abs, tag = 'smem constant byte address 0x4 - core index']
  #allocation1 [shape = 'u32[72,128]{1,0:T(1,128)}', space=vmem, size = 0x9000, scoped, tag = 'internal scratch']
  %s0 = inlined_call_operand.vmem [shape: bf16[512,36], index: 0, kind: input, shape index: {}]
  %s1 = inlined_call_operand.vmem [shape: bf16[36,128], index: 1, kind: input, shape index: {}]
  %s2 = inlined_call_operand.vmem [shape: f32[1,128], index: 2, kind: input, shape index: {}]
  %s3 = inlined_call_operand.vmem [shape: bf16[512,128], index: 3, kind: output, shape index: {}]
  %s4 = sld [smem:[#allocation0]]
  $region45: #{encoder_block_forward.2} parent=0
    _
  %s6 = ssub.s32 1, %s4
  %s7 = scalar_select 0, %s6, %s4
  loop: start=0, step=1, limit=4
  $region2: #{encoder_block_forward.2} parent=0 // loop_pre_header
    _
  $region3: #{encoder_block_forward.2} parent=0 // loop_header
    %s9 = sphi 0, %s13
    %p10 = scmp.ge.s32.totalorder %s9, 4
    %s19 = sphi 0, %s21
    %s22 = sphi 0, %s19
    %s23 = sphi 0, %s22
    %s39 = sphi 0, %s23
    %s43 = sphi 0, %s43
    %s45 = sphi 0, %s43
    %s46 = sphi 0, %s45
    %s60 = sphi 0, %s46
    %s64 = sphi 0, %s64
    %s66 = sphi 0, %s64
    %s67 = sphi 0, %s66
    %s81 = sphi 0, %s67
    %s87 = sphi 0, %s89
    %s90 = sphi 0, %s87
    %s91 = sphi 0, %s90
    %s107 = sphi 0, %s91
  $region4: #{encoder_block_forward.2} parent=0 // loop_header_branch
    %12 = sbr.rel (%p10) target = $region8
  $region5: #{encoder_block_forward.2} parent=0 // loop_body
    %s14 = ssub.s32 %s9, 1
    %s15 = ssub.s32 %s9, 2
    %s16 = sadd.s32 %s9, 1
    %s17 = ssub.s32 %s9, %s16
    %p18 = scmp.eq.s32.totalorder %s17, 0
    %s20 = sadd.s32 %s19, 1
    %s21 = scalar_select %p18, %s19, %s20
    %p24 = pneg %p18
    %p25 = scmp.eq.s32.totalorder %s9, 1
    %p26 = por %p24, %p25
    %p27 = scmp.ne.s32.totalorder %s19, %s22
    %p28 = scmp.eq.s32.totalorder %s9, 0
    %p29 = por %p27, %p28
    %p30 = scmp.ne.s32.totalorder %s19, %s22
    %p31 = scmp.eq.s32.totalorder %s14, 1
    %p32 = por %p30, %p31
    %p33 = scmp.ne.s32.totalorder %s22, %s23
    %p34 = scmp.eq.s32.totalorder %s14, 0
    %p35 = por %p33, %p34
    %p36 = scmp.ne.s32.totalorder %s22, %s23
    %p37 = scmp.eq.s32.totalorder %s15, 1
    %p38 = por %p36, %p37
    %p40 = scmp.ne.s32.totalorder %s23, %s39
    %p41 = scmp.eq.s32.totalorder %s15, 0
    %p42 = por %p40, %p41
    %s44 = sadd.s32 %s43, 1
    %p47 = scmp.eq.s32.totalorder %s9, 1
    %p48 = scmp.ne.s32.totalorder %s43, %s45
    %p49 = scmp.eq.s32.totalorder %s9, 0
    %p50 = por %p48, %p49
    %p51 = scmp.ne.s32.totalorder %s43, %s45
    %p52 = scmp.eq.s32.totalorder %s14, 1
    %p53 = por %p51, %p52
    %p54 = scmp.ne.s32.totalorder %s45, %s46
    %p55 = scmp.eq.s32.totalorder %s14, 0
    %p56 = por %p54, %p55
    %p57 = scmp.ne.s32.totalorder %s45, %s46
    %p58 = scmp.eq.s32.totalorder %s15, 1
    %p59 = por %p57, %p58
    %p61 = scmp.ne.s32.totalorder %s46, %s60
    %p62 = scmp.eq.s32.totalorder %s15, 0
    %p63 = por %p61, %p62
    %s65 = sadd.s32 %s64, 1
    %p68 = scmp.eq.s32.totalorder %s9, 1
    %p69 = scmp.ne.s32.totalorder %s64, %s66
    %p70 = scmp.eq.s32.totalorder %s9, 0
    %p71 = por %p69, %p70
    %p72 = scmp.ne.s32.totalorder %s64, %s66
    %p73 = scmp.eq.s32.totalorder %s14, 1
    %p74 = por %p72, %p73
    %p75 = scmp.ne.s32.totalorder %s66, %s67
    %p76 = scmp.eq.s32.totalorder %s14, 0
    %p77 = por %p75, %p76
    %p78 = scmp.ne.s32.totalorder %s66, %s67
    %p79 = scmp.eq.s32.totalorder %s15, 1
    %p80 = por %p78, %p79
    %p82 = scmp.ne.s32.totalorder %s67, %s81
    %p83 = scmp.eq.s32.totalorder %s15, 0
    %p84 = por %p82, %p83
    %s85 = ssub.s32 %s9, %s16
    %p86 = scmp.eq.s32.totalorder %s85, 0
    %s88 = sadd.s32 %s87, 1
    %s89 = scalar_select %p86, %s87, %s88
    %p92 = pneg %p86
    %p93 = scmp.eq.s32.totalorder %s9, 1
    %p94 = por %p92, %p93
    %p95 = scmp.ne.s32.totalorder %s87, %s90
    %p96 = scmp.eq.s32.totalorder %s9, 0
    %p97 = por %p95, %p96
    %p98 = scmp.ne.s32.totalorder %s87, %s90
    %p99 = scmp.eq.s32.totalorder %s14, 1
    %p100 = por %p98, %p99
    %p101 = scmp.ne.s32.totalorder %s90, %s91
    %p102 = scmp.eq.s32.totalorder %s14, 0
    %p103 = por %p101, %p102
    %p104 = scmp.ne.s32.totalorder %s90, %s91
    %p105 = scmp.eq.s32.totalorder %s15, 1
    %p106 = por %p104, %p105
    %p108 = scmp.ne.s32.totalorder %s91, %s107
    %p109 = scmp.eq.s32.totalorder %s15, 0
    %p110 = por %p108, %p109
    %p111 = scmp.le.s32.totalorder 1, %s9
    %p112 = scmp.lt.s32.totalorder %s9, 3
    %p113 = pnand %p111, %p112
    %p114 = pneg %p113
    // Predicated region
    $region9: #{encoder_block_forward.2} parent=5 // pred_check
      _
    $region10: #{encoder_block_forward.2} parent=5 // pred_check_branch
      %116 = sbr.rel (%p113) target = $region12
    $region11: #{encoder_block_forward.2} parent=5 // pred_region
      %s117 = ssub.s32 %s9, 1
      // Predicated region
      $region13: #{encoder_block_forward.2} parent=11 // pred_check
        %p118 = pneg %p56
      $region14: #{encoder_block_forward.2} parent=11 // pred_check_branch
        %120 = sbr.rel (%p118) target = $region16
      $region15: #{encoder_block_forward.2} parent=11 // pred_region
        _
      $region16: #{encoder_block_forward.2} parent=11 // pred_fallthru
        _
      // Predicated region
      $region17: #{encoder_block_forward.2} parent=11 // pred_check
        %p121 = pneg %p77
      $region18: #{encoder_block_forward.2} parent=11 // pred_check_branch
        %123 = sbr.rel (%p121) target = $region20
      $region19: #{encoder_block_forward.2} parent=11 // pred_region
        _
      $region20: #{encoder_block_forward.2} parent=11 // pred_fallthru
        _
    $region12: #{encoder_block_forward.2} parent=5 // pred_fallthru
      _
    %p124 = scmp.lt.s32.totalorder %s9, 2
    // Predicated region
    $region21: #{encoder_block_forward.2} parent=5 // pred_check
      %p125 = pneg %p124
    $region22: #{encoder_block_forward.2} parent=5 // pred_check_branch
      %127 = sbr.rel (%p125) target = $region24
    $region23: #{encoder_block_forward.2} parent=5 // pred_region
      // Predicated region
      $region25: #{encoder_block_forward.2} parent=23 // pred_check
        %p128 = pneg %p29
      $region26: #{encoder_block_forward.2} parent=23 // pred_check_branch
        %130 = sbr.rel (%p128) target = $region28
      $region27: #{encoder_block_forward.2} parent=23 // pred_region
        %s131 = smul.u32 32, %s9
        %p132 = scmp.lt.s32.totalorder %s131, 63
        %s133 = scalar_select %p132, %s131, 63
        %s134 = smul.addr %s133, 4
        %s135 = scalar_lea.vmem %s0, %s134
        %s136 = smul.u32 32, %s9
      $region28: #{encoder_block_forward.2} parent=23 // pred_fallthru
        _
    $region24: #{encoder_block_forward.2} parent=5 // pred_fallthru
      _
    %p137 = scmp.le.s32.totalorder 1, %s9
    %p138 = scmp.lt.s32.totalorder %s9, 3
    %p139 = pnand %p137, %p138
    %p140 = pneg %p139
    // Predicated region
    $region29: #{encoder_block_forward.2} parent=5 // pred_check
      _
    $region30: #{encoder_block_forward.2} parent=5 // pred_check_branch
      %142 = sbr.rel (%p139) target = $region32
    $region31: #{encoder_block_forward.2} parent=5 // pred_region
      %s143 = ssub.s32 %s9, 1
      %s144 = smul.u32 32, %s14
      %p145 = scmp.lt.s32.totalorder %s144, 63
      %s146 = scalar_select %p145, %s144, 63
      %s147 = smul.addr %s146, 4
      %s148 = scalar_lea.vmem %s0, %s147
      %p149 = pneg %p35
      %p150 = pneg %p32
      %p151 = pneg %p56
      %p152 = pneg %p53
      %p153 = pneg %p77
      %p154 = pneg %p74
      %p155 = pneg %p103
      %p156 = pneg %p100
      %s157 = smul.u32 32, %s14
      %p158 = scmp.lt.s32.totalorder %s157, 63
      %s159 = scalar_select %p158, %s157, 63
      %s160 = smul.addr %s159, 4
      %s161 = scalar_lea.vmem %s3, %s160
      %s162 = smul.u32 32, %s14
      %p163 = scmp.lt.s32.totalorder %s162, 63
      %s164 = scalar_select %p163, %s162, 63
      %s165 = smul.addr %s164, 4
      %s166 = scalar_lea.vmem %s0, %s165
      %s167 = smul.u32 32, %s14
      %s168 = smul.u32 32, %s14
      %p169 = scmp.lt.s32.totalorder %s168, 63
      %s170 = scalar_select %p169, %s168, 63
      %s171 = smul.addr %s170, 4
      %s172 = scalar_lea.vmem %s3, %s171
      %s173 = smul.u32 32, %s14
      %v175 = vld [vmem:[%s166] sm:$0xf]
      %v176 = vld [vmem:[%s166 + $0x4] sm:$0xf]
      %v177 = vld [vmem:[%s166 + $0x8] sm:$0xf]
      %v178 = vld [vmem:[%s166 + $0xc] sm:$0xf]
      %v179 = vld [vmem:[%s166 + $0x10] sm:$0xf]
      %v180 = vld [vmem:[%s166 + $0x14] sm:$0xf]
      %v181 = vld [vmem:[%s166 + $0x18] sm:$0xf]
      %v182 = vld [vmem:[%s166 + $0x1c] sm:$0xf]
      %v183 = vld [vmem:[%s166 + $0x20] sm:$0xf]
      %v184 = vld [vmem:[%s166 + $0x24] sm:$0xf]
      %v185 = vld [vmem:[%s166 + $0x28] sm:$0xf]
      %v186 = vld [vmem:[%s166 + $0x2c] sm:$0xf]
      %v187 = vld [vmem:[%s166 + $0x30] sm:$0xf]
      %v188 = vld [vmem:[%s166 + $0x34] sm:$0xf]
      %v189 = vld [vmem:[%s166 + $0x38] sm:$0xf]
      %v190 = vld [vmem:[%s166 + $0x3c] sm:$0xf]
      %v191 = vld [vmem:[%s166 + $0x40] sm:$0xf]
      %v192 = vld [vmem:[%s166 + $0x44] sm:$0xf]
      %v193 = vld [vmem:[%s166 + $0x48] sm:$0xf]
      %v194 = vld [vmem:[%s166 + $0x4c] sm:$0xf]
      %v195 = vld [vmem:[%s166 + $0x50] sm:$0xf]
      %v196 = vld [vmem:[%s166 + $0x54] sm:$0xf]
      %v197 = vld [vmem:[%s166 + $0x58] sm:$0xf]
      %v198 = vld [vmem:[%s166 + $0x5c] sm:$0xf]
      %v199 = vld [vmem:[%s166 + $0x60] sm:$0xf]
      %v200 = vld [vmem:[%s166 + $0x64] sm:$0xf]
      %v201 = vld [vmem:[%s166 + $0x68] sm:$0xf]
      %v202 = vld [vmem:[%s166 + $0x6c] sm:$0xf]
      %v203 = vld [vmem:[%s166 + $0x70] sm:$0xf]
      %v204 = vld [vmem:[%s166 + $0x74] sm:$0xf]
      %v205 = vld [vmem:[%s166 + $0x78] sm:$0xf]
      %v206 = vld [vmem:[%s166 + $0x7c] sm:$0xf]
      %v207 = vld [vmem:[%s1] sm:$0xf]
      %v208 = vld [vmem:[%s1 + $0x4] sm:$0xf]
      %v209 = vld [vmem:[%s1 + $0x8] sm:$0xf]
      %v210 = vld [vmem:[%s1 + $0xc] sm:$0xf]
      %v211 = vld [vmem:[%s1 + $0x10] sm:$0x3]
      %v212 = vld [vmem:[%s2] sm:$0x1]
      %v214 = vperm.slane %v212, 0
      %v248 = vunpack.c.l.b16 %v175
      %v249 = vunpack.c.l.b16 %v176
      %v250 = vunpack.c.l.b16 %v177
      %v251 = vunpack.c.l.b16 %v178
      %v252 = vunpack.c.l.b16 %v179
      %v253 = vunpack.c.l.b16 %v180
      %v254 = vunpack.c.l.b16 %v181
      %v255 = vunpack.c.l.b16 %v182
      %v256 = vunpack.c.l.b16 %v183
      %v257 = vunpack.c.l.b16 %v184
      %v258 = vunpack.c.l.b16 %v185
      %v259 = vunpack.c.l.b16 %v186
      %v260 = vunpack.c.l.b16 %v187
      %v261 = vunpack.c.l.b16 %v188
      %v262 = vunpack.c.l.b16 %v189
      %v263 = vunpack.c.l.b16 %v190
      %v264 = vunpack.c.l.b16 %v191
      %v265 = vunpack.c.l.b16 %v192
      %v266 = vunpack.c.l.b16 %v193
      %v267 = vunpack.c.l.b16 %v194
      %v268 = vunpack.c.l.b16 %v195
      %v269 = vunpack.c.l.b16 %v196
      %v270 = vunpack.c.l.b16 %v197
      %v271 = vunpack.c.l.b16 %v198
      %v272 = vunpack.c.l.b16 %v199
      %v273 = vunpack.c.l.b16 %v200
      %v274 = vunpack.c.l.b16 %v201
      %v275 = vunpack.c.l.b16 %v202
      %v276 = vunpack.c.l.b16 %v203
      %v277 = vunpack.c.l.b16 %v204
      %v278 = vunpack.c.l.b16 %v205
      %v279 = vunpack.c.l.b16 %v206
      %v280 = vpack.c.b16 %v249, %v248
      %v281 = vpack.c.b16 %v251, %v250
      %v282 = vpack.c.b16 %v253, %v252
      %v283 = vpack.c.b16 %v255, %v254
      %v284 = vpack.c.b16 %v257, %v256
      %v285 = vpack.c.b16 %v259, %v258
      %v286 = vpack.c.b16 %v261, %v260
      %v287 = vpack.c.b16 %v263, %v262
      %v288 = vpack.c.b16 %v265, %v264
      %v289 = vpack.c.b16 %v267, %v266
      %v290 = vpack.c.b16 %v269, %v268
      %v291 = vpack.c.b16 %v271, %v270
      %v292 = vpack.c.b16 %v273, %v272
      %v293 = vpack.c.b16 %v275, %v274
      %v294 = vpack.c.b16 %v277, %v276
      %v295 = vpack.c.b16 %v279, %v278
      %v301 = vunpack.c.l.b16 %v207
      %v302 = vunpack.c.l.b16 %v208
      %v303 = vunpack.c.l.b16 %v209
      %v304 = vunpack.c.l.b16 %v210
      %v305 = vunpack.c.l.b16 %v211
      %v306 = vpack.c.b16 %v302, %v301
      %v307 = vpack.c.b16 %v304, %v303
      %v308 = vpack.c.b16 %v305, %v305
      %vm311 = vcmask 293888
      %v313 = vsel %vm311, %v280, 0
      %v316 = vsel %vm311, %v281, 0
      %v319 = vsel %vm311, %v282, 0
      %v322 = vsel %vm311, %v283, 0
      %v325 = vsel %vm311, %v284, 0
      %v328 = vsel %vm311, %v285, 0
      %v331 = vsel %vm311, %v286, 0
      %v334 = vsel %vm311, %v287, 0
      %v337 = vsel %vm311, %v288, 0
      %v340 = vsel %vm311, %v289, 0
      %v343 = vsel %vm311, %v290, 0
      %v346 = vsel %vm311, %v291, 0
      %v349 = vsel %vm311, %v292, 0
      %v352 = vsel %vm311, %v293, 0
      %v355 = vsel %vm311, %v294, 0
      %v358 = vsel %vm311, %v295, 0
      %vm360 = vcmask 1041408
      %v362 = vsel %vm360, %v308, 0
      %364 = vmatpush.bf16.msra.mxu0 0
      %365 = vmatpush.bf16.msra.mxu0 0
      %366 = vmatpush.bf16.msra.mxu0 0
      %367 = vmatpush.bf16.msra.mxu0 0
      %368 = vmatpush.bf16.msra.mxu0 0
      %369 = vmatpush.bf16.msra.mxu0 %v362
      %370 = vmatpush.bf16.msra.mxu0 %v307
      %371 = vmatpush.bf16.msra.mxu0 %v306
      %372 = vmatmul.bf16.gmra.mxu0 %v313
      %v373 = vpop.f32.mrf.mxu0
      %v374 = vadd.f32 %v214, %v373
      %v375 = vpop.f32.mrf.mxu0
      %v376 = vadd.f32 %v214, %v375
      %377 = vmatmul.bf16.gmra.mxu0 %v316
      %v378 = vpop.f32.mrf.mxu0
      %v379 = vadd.f32 %v214, %v378
      %v380 = vpop.f32.mrf.mxu0
      %v381 = vadd.f32 %v214, %v380
      %382 = vmatmul.bf16.gmra.mxu0 %v319
      %v383 = vpop.f32.mrf.mxu0
      %v384 = vadd.f32 %v214, %v383
      %v385 = vpop.f32.mrf.mxu0
      %v386 = vadd.f32 %v214, %v385
      %387 = vmatmul.bf16.gmra.mxu0 %v322
      %v388 = vpop.f32.mrf.mxu0
      %v389 = vadd.f32 %v214, %v388
      %v390 = vpop.f32.mrf.mxu0
      %v391 = vadd.f32 %v214, %v390
      %392 = vmatmul.bf16.gmra.mxu0 %v325
      %v393 = vpop.f32.mrf.mxu0
      %v394 = vadd.f32 %v214, %v393
      %v395 = vpop.f32.mrf.mxu0
      %v396 = vadd.f32 %v214, %v395
      %397 = vmatmul.bf16.gmra.mxu0 %v328
      %v398 = vpop.f32.mrf.mxu0
      %v399 = vadd.f32 %v214, %v398
      %v400 = vpop.f32.mrf.mxu0
      %v401 = vadd.f32 %v214, %v400
      %402 = vmatmul.bf16.gmra.mxu0 %v331
      %v403 = vpop.f32.mrf.mxu0
      %v404 = vadd.f32 %v214, %v403
      %v405 = vpop.f32.mrf.mxu0
      %v406 = vadd.f32 %v214, %v405
      %407 = vmatmul.bf16.gmra.mxu0 %v334
      %v408 = vpop.f32.mrf.mxu0
      %v409 = vadd.f32 %v214, %v408
      %v410 = vpop.f32.mrf.mxu0
      %v411 = vadd.f32 %v214, %v410
      %412 = vmatmul.bf16.gmra.mxu0 %v337
      %v413 = vpop.f32.mrf.mxu0
      %v414 = vadd.f32 %v214, %v413
      %v415 = vpop.f32.mrf.mxu0
      %v416 = vadd.f32 %v214, %v415
      %417 = vmatmul.bf16.gmra.mxu0 %v340
      %v418 = vpop.f32.mrf.mxu0
      %v419 = vadd.f32 %v214, %v418
      %v420 = vpop.f32.mrf.mxu0
      %v421 = vadd.f32 %v214, %v420
      %422 = vmatmul.bf16.gmra.mxu0 %v343
      %v423 = vpop.f32.mrf.mxu0
      %v424 = vadd.f32 %v214, %v423
      %v425 = vpop.f32.mrf.mxu0
      %v426 = vadd.f32 %v214, %v425
      %427 = vmatmul.bf16.gmra.mxu0 %v346
      %v428 = vpop.f32.mrf.mxu0
      %v429 = vadd.f32 %v214, %v428
      %v430 = vpop.f32.mrf.mxu0
      %v431 = vadd.f32 %v214, %v430
      %432 = vmatmul.bf16.gmra.mxu0 %v349
      %v433 = vpop.f32.mrf.mxu0
      %v434 = vadd.f32 %v214, %v433
      %v435 = vpop.f32.mrf.mxu0
      %v436 = vadd.f32 %v214, %v435
      %437 = vmatmul.bf16.gmra.mxu0 %v352
      %v438 = vpop.f32.mrf.mxu0
      %v439 = vadd.f32 %v214, %v438
      %v440 = vpop.f32.mrf.mxu0
      %v441 = vadd.f32 %v214, %v440
      %442 = vmatmul.bf16.gmra.mxu0 %v355
      %v443 = vpop.f32.mrf.mxu0
      %v444 = vadd.f32 %v214, %v443
      %v445 = vpop.f32.mrf.mxu0
      %v446 = vadd.f32 %v214, %v445
      %447 = vmatmul.bf16.gmra.mxu0 %v358
      %v448 = vpop.f32.mrf.mxu0
      %v449 = vadd.f32 %v214, %v448
      %v450 = vpop.f32.mrf.mxu0
      %v451 = vadd.f32 %v214, %v450
      %452 = vdwg.mxu0
      %v453 = vmax.f32 %v374, 0.0
      %v454 = vmax.f32 %v376, 0.0
      %v455 = vmax.f32 %v379, 0.0
      %v456 = vmax.f32 %v381, 0.0
      %v457 = vmax.f32 %v384, 0.0
      %v458 = vmax.f32 %v386, 0.0
      %v459 = vmax.f32 %v389, 0.0
      %v460 = vmax.f32 %v391, 0.0
      %v461 = vmax.f32 %v394, 0.0
      %v462 = vmax.f32 %v396, 0.0
      %v463 = vmax.f32 %v399, 0.0
      %v464 = vmax.f32 %v401, 0.0
      %v465 = vmax.f32 %v404, 0.0
      %v466 = vmax.f32 %v406, 0.0
      %v467 = vmax.f32 %v409, 0.0
      %v468 = vmax.f32 %v411, 0.0
      %v469 = vmax.f32 %v414, 0.0
      %v470 = vmax.f32 %v416, 0.0
      %v471 = vmax.f32 %v419, 0.0
      %v472 = vmax.f32 %v421, 0.0
      %v473 = vmax.f32 %v424, 0.0
      %v474 = vmax.f32 %v426, 0.0
      %v475 = vmax.f32 %v429, 0.0
      %v476 = vmax.f32 %v431, 0.0
      %v477 = vmax.f32 %v434, 0.0
      %v478 = vmax.f32 %v436, 0.0
      %v479 = vmax.f32 %v439, 0.0
      %v480 = vmax.f32 %v441, 0.0
      %v481 = vmax.f32 %v444, 0.0
      %v482 = vmax.f32 %v446, 0.0
      %v483 = vmax.f32 %v449, 0.0
      %v484 = vmax.f32 %v451, 0.0
      %v485 = vpack.c.bf16 %v453, %v453
      %v486 = vpack.c.bf16 %v454, %v454
      %v487 = vpack.c.bf16 %v455, %v455
      %v488 = vpack.c.bf16 %v456, %v456
      %v489 = vpack.c.bf16 %v457, %v457
      %v490 = vpack.c.bf16 %v458, %v458
      %v491 = vpack.c.bf16 %v459, %v459
      %v492 = vpack.c.bf16 %v460, %v460
      %v493 = vpack.c.bf16 %v461, %v461
      %v494 = vpack.c.bf16 %v462, %v462
      %v495 = vpack.c.bf16 %v463, %v463
      %v496 = vpack.c.bf16 %v464, %v464
      %v497 = vpack.c.bf16 %v465, %v465
      %v498 = vpack.c.bf16 %v466, %v466
      %v499 = vpack.c.bf16 %v467, %v467
      %v500 = vpack.c.bf16 %v468, %v468
      %v501 = vpack.c.bf16 %v469, %v469
      %v502 = vpack.c.bf16 %v470, %v470
      %v503 = vpack.c.bf16 %v471, %v471
      %v504 = vpack.c.bf16 %v472, %v472
      %v505 = vpack.c.bf16 %v473, %v473
      %v506 = vpack.c.bf16 %v474, %v474
      %v507 = vpack.c.bf16 %v475, %v475
      %v508 = vpack.c.bf16 %v476, %v476
      %v509 = vpack.c.bf16 %v477, %v477
      %v510 = vpack.c.bf16 %v478, %v478
      %v511 = vpack.c.bf16 %v479, %v479
      %v512 = vpack.c.bf16 %v480, %v480
      %v513 = vpack.c.bf16 %v481, %v481
      %v514 = vpack.c.bf16 %v482, %v482
      %v515 = vpack.c.bf16 %v483, %v483
      %v516 = vpack.c.bf16 %v484, %v484
      %517 = vst [vmem:[%s172] sm:$0xf] %v485
      %518 = vst [vmem:[%s172 + $0x4] sm:$0xf] %v486
      %519 = vst [vmem:[%s172 + $0x8] sm:$0xf] %v487
      %520 = vst [vmem:[%s172 + $0xc] sm:$0xf] %v488
      %521 = vst [vmem:[%s172 + $0x10] sm:$0xf] %v489
      %522 = vst [vmem:[%s172 + $0x14] sm:$0xf] %v490
      %523 = vst [vmem:[%s172 + $0x18] sm:$0xf] %v491
      %524 = vst [vmem:[%s172 + $0x1c] sm:$0xf] %v492
      %525 = vst [vmem:[%s172 + $0x20] sm:$0xf] %v493
      %526 = vst [vmem:[%s172 + $0x24] sm:$0xf] %v494
      %527 = vst [vmem:[%s172 + $0x28] sm:$0xf] %v495
      %528 = vst [vmem:[%s172 + $0x2c] sm:$0xf] %v496
      %529 = vst [vmem:[%s172 + $0x30] sm:$0xf] %v497
      %530 = vst [vmem:[%s172 + $0x34] sm:$0xf] %v498
      %531 = vst [vmem:[%s172 + $0x38] sm:$0xf] %v499
      %532 = vst [vmem:[%s172 + $0x3c] sm:$0xf] %v500
      %533 = vst [vmem:[%s172 + $0x40] sm:$0xf] %v501
      %534 = vst [vmem:[%s172 + $0x44] sm:$0xf] %v502
      %535 = vst [vmem:[%s172 + $0x48] sm:$0xf] %v503
      %536 = vst [vmem:[%s172 + $0x4c] sm:$0xf] %v504
      %537 = vst [vmem:[%s172 + $0x50] sm:$0xf] %v505
      %538 = vst [vmem:[%s172 + $0x54] sm:$0xf] %v506
      %539 = vst [vmem:[%s172 + $0x58] sm:$0xf] %v507
      %540 = vst [vmem:[%s172 + $0x5c] sm:$0xf] %v508
      %541 = vst [vmem:[%s172 + $0x60] sm:$0xf] %v509
      %542 = vst [vmem:[%s172 + $0x64] sm:$0xf] %v510
      %543 = vst [vmem:[%s172 + $0x68] sm:$0xf] %v511
      %544 = vst [vmem:[%s172 + $0x6c] sm:$0xf] %v512
      %545 = vst [vmem:[%s172 + $0x70] sm:$0xf] %v513
      %546 = vst [vmem:[%s172 + $0x74] sm:$0xf] %v514
      %547 = vst [vmem:[%s172 + $0x78] sm:$0xf] %v515
      %548 = vst [vmem:[%s172 + $0x7c] sm:$0xf] %v516
      %s549 = smul.u32 32, %s14
      %p550 = scmp.lt.s32.totalorder %s549, 63
      %s551 = scalar_select %p550, %s549, 63
      %s552 = smul.addr %s551, 4
      %s553 = scalar_lea.vmem %s3, %s552
      // Predicated region
      $region33: #{encoder_block_forward.2} parent=31 // pred_check
        %p554 = pneg %p100
      $region34: #{encoder_block_forward.2} parent=31 // pred_check_branch
        %556 = sbr.rel (%p554) target = $region36
      $region35: #{encoder_block_forward.2} parent=31 // pred_region
        %s557 = smul.u32 32, %s14
      $region36: #{encoder_block_forward.2} parent=31 // pred_fallthru
        _
    $region32: #{encoder_block_forward.2} parent=5 // pred_fallthru
      _
    %p558 = scmp.le.s32.totalorder 2, %s9
    // Predicated region
    $region37: #{encoder_block_forward.2} parent=5 // pred_check
      %p559 = pneg %p558
    $region38: #{encoder_block_forward.2} parent=5 // pred_check_branch
      %561 = sbr.rel (%p559) target = $region40
    $region39: #{encoder_block_forward.2} parent=5 // pred_region
      %s562 = ssub.s32 %s9, 2
      // Predicated region
      $region41: #{encoder_block_forward.2} parent=39 // pred_check
        %p563 = pneg %p106
      $region42: #{encoder_block_forward.2} parent=39 // pred_check_branch
        %565 = sbr.rel (%p563) target = $region44
      $region43: #{encoder_block_forward.2} parent=39 // pred_region
        %s566 = smul.u32 32, %s15
        %p567 = scmp.lt.s32.totalorder %s566, 63
        %s568 = scalar_select %p567, %s566, 63
        %s569 = smul.addr %s568, 4
        %s570 = scalar_lea.vmem %s3, %s569
      $region44: #{encoder_block_forward.2} parent=39 // pred_fallthru
        _
    $region40: #{encoder_block_forward.2} parent=5 // pred_fallthru
      _
  $region6: #{encoder_block_forward.2} parent=0 // loop_footer
    %s13 = sadd.s32 1, %s9
  $region7: #{encoder_block_forward.2} parent=0 // loop_footer_branch
    %8 = sbr.rel target = $region3
  $region8: #{encoder_block_forward.2} parent=0 // loop_exit
    _

// kernel: encoder_block_forward.3
$region0: #{encoder_block_forward.3}
  #allocation0 [shape = 'u32[]', space=smem, size = 0x4, offset = 0x4, fixed_abs, tag = 'smem constant byte address 0x4 - core index']
  #allocation1 [shape = 'u32[72,128]{1,0:T(1,128)}', space=vmem, size = 0x9000, scoped, tag = 'internal scratch']
  #allocation2 [shape = 'f32[128,128]{1,0:T(8,128)}', space=vmem, size = 0x10000, scoped, tag = 'scratch operand']
  %s0 = inlined_call_operand.vmem [shape: bf16[512,1152], index: 0, kind: input, shape index: {}]
  %s1 = inlined_call_operand.vmem [shape: bf16[1152,128], index: 1, kind: input, shape index: {}]
  %s2 = inlined_call_operand.vmem [shape: f32[1,128], index: 2, kind: input, shape index: {}]
  %s3 = inlined_call_operand.hbm [shape: f32[512,128], index: 3, kind: output, shape index: {0}]
  %s4 = inlined_call_operand.hbm [shape: f32[128,128], index: 4, kind: output, shape index: {1}]
  %5 = xla_tuple %s3, %s4
  %s6 = sld [smem:[#allocation0]]
  $region53: #{encoder_block_forward.3} parent=0
    _
  %s8 = ssub.s32 1, %s6
  %s9 = scalar_select 0, %s8, %s6
  $region1: #{encoder_block_forward.3} parent=0
    #allocation3 [shape = 'u8[262144]{0}', space=vmem, size = 0x40000, scoped, tag = 'output window, operand 0']
    #allocation4 [shape = 's32[2]{0}', space=sflag, size = 0x8, scoped, tag = 'scoped memory for encoder_block_forward.3']
    #allocation5 [shape = 'u8[65536]{0}', space=vmem, size = 0x10000, scoped, tag = 'output window, operand 1']
    #allocation6 [shape = 's32[2]{0}', space=sflag, size = 0x8, scoped, tag = 'scoped memory for encoder_block_forward.3']
    %10 = vsyncpa [#allocation4], 0
    %s11 = scalar_lea.sflag [#allocation4], 1
    %12 = vsyncpa %s11, 0
    %13 = vsyncpa [#allocation6], 0
    %s14 = scalar_lea.sflag [#allocation6], 1
    %15 = vsyncpa %s14, 0
    loop: start=0, step=1, limit=4
    $region2: #{encoder_block_forward.3} parent=1 // loop_pre_header
      _
    $region3: #{encoder_block_forward.3} parent=1 // loop_header
      %s17 = sphi 0, %s21
      %p18 = scmp.ge.s32.totalorder %s17, 4
      %s27 = sphi 0, %s29
      %s30 = sphi 0, %s27
      %s31 = sphi 0, %s30
      %s47 = sphi 0, %s31
      %s51 = sphi 0, %s51
      %s53 = sphi 0, %s51
      %s54 = sphi 0, %s53
      %s68 = sphi 0, %s54
      %s72 = sphi 0, %s72
      %s74 = sphi 0, %s72
      %s75 = sphi 0, %s74
      %s89 = sphi 0, %s75
      %s95 = sphi 0, %s97
      %s98 = sphi 0, %s95
      %s99 = sphi 0, %s98
      %s115 = sphi 0, %s99
      %s121 = sphi 0, %s123
      %s124 = sphi 0, %s121
      %s125 = sphi 0, %s124
      %s141 = sphi 0, %s125
    $region4: #{encoder_block_forward.3} parent=1 // loop_header_branch
      %20 = sbr.rel (%p18) target = $region8
    $region5: #{encoder_block_forward.3} parent=1 // loop_body
      %s22 = ssub.s32 %s17, 1
      %s23 = ssub.s32 %s17, 2
      %s24 = sadd.s32 %s17, 1
      %s25 = ssub.s32 %s17, %s24
      %p26 = scmp.eq.s32.totalorder %s25, 0
      %s28 = sadd.s32 %s27, 1
      %s29 = scalar_select %p26, %s27, %s28
      %p32 = pneg %p26
      %p33 = scmp.eq.s32.totalorder %s17, 1
      %p34 = por %p32, %p33
      %p35 = scmp.ne.s32.totalorder %s27, %s30
      %p36 = scmp.eq.s32.totalorder %s17, 0
      %p37 = por %p35, %p36
      %p38 = scmp.ne.s32.totalorder %s27, %s30
      %p39 = scmp.eq.s32.totalorder %s22, 1
      %p40 = por %p38, %p39
      %p41 = scmp.ne.s32.totalorder %s30, %s31
      %p42 = scmp.eq.s32.totalorder %s22, 0
      %p43 = por %p41, %p42
      %p44 = scmp.ne.s32.totalorder %s30, %s31
      %p45 = scmp.eq.s32.totalorder %s23, 1
      %p46 = por %p44, %p45
      %p48 = scmp.ne.s32.totalorder %s31, %s47
      %p49 = scmp.eq.s32.totalorder %s23, 0
      %p50 = por %p48, %p49
      %s52 = sadd.s32 %s51, 1
      %p55 = scmp.eq.s32.totalorder %s17, 1
      %p56 = scmp.ne.s32.totalorder %s51, %s53
      %p57 = scmp.eq.s32.totalorder %s17, 0
      %p58 = por %p56, %p57
      %p59 = scmp.ne.s32.totalorder %s51, %s53
      %p60 = scmp.eq.s32.totalorder %s22, 1
      %p61 = por %p59, %p60
      %p62 = scmp.ne.s32.totalorder %s53, %s54
      %p63 = scmp.eq.s32.totalorder %s22, 0
      %p64 = por %p62, %p63
      %p65 = scmp.ne.s32.totalorder %s53, %s54
      %p66 = scmp.eq.s32.totalorder %s23, 1
      %p67 = por %p65, %p66
      %p69 = scmp.ne.s32.totalorder %s54, %s68
      %p70 = scmp.eq.s32.totalorder %s23, 0
      %p71 = por %p69, %p70
      %s73 = sadd.s32 %s72, 1
      %p76 = scmp.eq.s32.totalorder %s17, 1
      %p77 = scmp.ne.s32.totalorder %s72, %s74
      %p78 = scmp.eq.s32.totalorder %s17, 0
      %p79 = por %p77, %p78
      %p80 = scmp.ne.s32.totalorder %s72, %s74
      %p81 = scmp.eq.s32.totalorder %s22, 1
      %p82 = por %p80, %p81
      %p83 = scmp.ne.s32.totalorder %s74, %s75
      %p84 = scmp.eq.s32.totalorder %s22, 0
      %p85 = por %p83, %p84
      %p86 = scmp.ne.s32.totalorder %s74, %s75
      %p87 = scmp.eq.s32.totalorder %s23, 1
      %p88 = por %p86, %p87
      %p90 = scmp.ne.s32.totalorder %s75, %s89
      %p91 = scmp.eq.s32.totalorder %s23, 0
      %p92 = por %p90, %p91
      %s93 = ssub.s32 %s17, %s24
      %p94 = scmp.eq.s32.totalorder %s93, 0
      %s96 = sadd.s32 %s95, 1
      %s97 = scalar_select %p94, %s95, %s96
      %p100 = pneg %p94
      %p101 = scmp.eq.s32.totalorder %s17, 1
      %p102 = por %p100, %p101
      %p103 = scmp.ne.s32.totalorder %s95, %s98
      %p104 = scmp.eq.s32.totalorder %s17, 0
      %p105 = por %p103, %p104
      %p106 = scmp.ne.s32.totalorder %s95, %s98
      %p107 = scmp.eq.s32.totalorder %s22, 1
      %p108 = por %p106, %p107
      %p109 = scmp.ne.s32.totalorder %s98, %s99
      %p110 = scmp.eq.s32.totalorder %s22, 0
      %p111 = por %p109, %p110
      %p112 = scmp.ne.s32.totalorder %s98, %s99
      %p113 = scmp.eq.s32.totalorder %s23, 1
      %p114 = por %p112, %p113
      %p116 = scmp.ne.s32.totalorder %s99, %s115
      %p117 = scmp.eq.s32.totalorder %s23, 0
      %p118 = por %p116, %p117
      %s119 = ssub.s32 %s17, %s24
      %p120 = scmp.eq.s32.totalorder %s119, 0
      %s122 = sadd.s32 %s121, 1
      %s123 = scalar_select %p120, %s121, %s122
      %p126 = pneg %p120
      %p127 = scmp.eq.s32.totalorder %s17, 1
      %p128 = por %p126, %p127
      %p129 = scmp.ne.s32.totalorder %s121, %s124
      %p130 = scmp.eq.s32.totalorder %s17, 0
      %p131 = por %p129, %p130
      %p132 = scmp.ne.s32.totalorder %s121, %s124
      %p133 = scmp.eq.s32.totalorder %s22, 1
      %p134 = por %p132, %p133
      %p135 = scmp.ne.s32.totalorder %s124, %s125
      %p136 = scmp.eq.s32.totalorder %s22, 0
      %p137 = por %p135, %p136
      %p138 = scmp.ne.s32.totalorder %s124, %s125
      %p139 = scmp.eq.s32.totalorder %s23, 1
      %p140 = por %p138, %p139
      %p142 = scmp.ne.s32.totalorder %s125, %s141
      %p143 = scmp.eq.s32.totalorder %s23, 0
      %p144 = por %p142, %p143
      %p145 = scmp.le.s32.totalorder 1, %s17
      %p146 = scmp.lt.s32.totalorder %s17, 3
      %p147 = pnand %p145, %p146
      %p148 = pneg %p147
      // Predicated region
      $region9: #{encoder_block_forward.3} parent=5 // pred_check
        _
      $region10: #{encoder_block_forward.3} parent=5 // pred_check_branch
        %150 = sbr.rel (%p147) target = $region12
      $region11: #{encoder_block_forward.3} parent=5 // pred_region
        %s151 = ssub.s32 %s17, 1
        // Predicated region
        $region13: #{encoder_block_forward.3} parent=11 // pred_check
          %p152 = pneg %p64
        $region14: #{encoder_block_forward.3} parent=11 // pred_check_branch
          %154 = sbr.rel (%p152) target = $region16
        $region15: #{encoder_block_forward.3} parent=11 // pred_region
          _
        $region16: #{encoder_block_forward.3} parent=11 // pred_fallthru
          _
        // Predicated region
        $region17: #{encoder_block_forward.3} parent=11 // pred_check
          %p155 = pneg %p85
        $region18: #{encoder_block_forward.3} parent=11 // pred_check_branch
          %157 = sbr.rel (%p155) target = $region20
        $region19: #{encoder_block_forward.3} parent=11 // pred_region
          _
        $region20: #{encoder_block_forward.3} parent=11 // pred_fallthru
          _
      $region12: #{encoder_block_forward.3} parent=5 // pred_fallthru
        _
      %p158 = scmp.lt.s32.totalorder %s17, 2
      // Predicated region
      $region21: #{encoder_block_forward.3} parent=5 // pred_check
        %p159 = pneg %p158
      $region22: #{encoder_block_forward.3} parent=5 // pred_check_branch
        %161 = sbr.rel (%p159) target = $region24
      $region23: #{encoder_block_forward.3} parent=5 // pred_region
        // Predicated region
        $region25: #{encoder_block_forward.3} parent=23 // pred_check
          %p162 = pneg %p37
        $region26: #{encoder_block_forward.3} parent=23 // pred_check_branch
          %164 = sbr.rel (%p162) target = $region28
        $region27: #{encoder_block_forward.3} parent=23 // pred_region
          %s165 = smul.u32 32, %s17
          %p166 = scmp.lt.s32.totalorder %s165, 63
          %s167 = scalar_select %p166, %s165, 63
          %s168 = smul.addr %s167, 9
          %s169 = smul.addr %s168, 4
          %s170 = scalar_lea.vmem %s0, %s169
          %s171 = smul.u32 32, %s17
        $region28: #{encoder_block_forward.3} parent=23 // pred_fallthru
          _
      $region24: #{encoder_block_forward.3} parent=5 // pred_fallthru
        _
      %p172 = scmp.le.s32.totalorder 1, %s17
      %p173 = scmp.lt.s32.totalorder %s17, 3
      %p174 = pnand %p172, %p173
      %p175 = pneg %p174
      // Predicated region
      $region29: #{encoder_block_forward.3} parent=5 // pred_check
        _
      $region30: #{encoder_block_forward.3} parent=5 // pred_check_branch
        %177 = sbr.rel (%p174) target = $region32
      $region31: #{encoder_block_forward.3} parent=5 // pred_region
        %s178 = ssub.s32 %s17, 1
        %s179 = smul.u32 32, %s22
        %p180 = scmp.lt.s32.totalorder %s179, 63
        %s181 = scalar_select %p180, %s179, 63
        %s182 = smul.addr %s181, 9
        %s183 = smul.addr %s182, 4
        %s184 = scalar_lea.vmem %s0, %s183
        %p185 = pneg %p43
        %p186 = pneg %p40
        %p187 = pneg %p64
        %p188 = pneg %p61
        %p189 = pneg %p85
        %p190 = pneg %p82
        %p191 = pneg %p111
        %p192 = pneg %p108
        %s193 = sand.u32 %s98, 1
        %s194 = scalar_lea.sflag [#allocation4], %s193
        %s195 = sand.u32 %s98, 1
        %s196 = smul.addr %s195, 256
        %s197 = scalar_lea.vmem [#allocation3], %s196
        %p198 = pneg %p137
        %p199 = pneg %p134
        %s200 = sand.u32 %s124, 1
        %s201 = scalar_lea.sflag [#allocation6], %s200
        %s202 = sand.u32 %s124, 1
        %s203 = smul.addr %s202, 64
        %s204 = scalar_lea.vmem [#allocation5], %s203
        %s205 = smul.u32 32, %s22
        %p206 = scmp.lt.s32.totalorder %s205, 63
        %s207 = scalar_select %p206, %s205, 63
        %s208 = smul.addr %s207, 9
        %s209 = smul.addr %s208, 4
        %s210 = scalar_lea.vmem %s0, %s209
        %s211 = smul.u32 32, %s22
        %s212 = smul.u32 32, %s22
        %s213 = smul.u32 8, %s22
        %v214 = vld [vmem:[%s210] sm:$0xff]
        %v215 = vld [vmem:[%s210 + $0x8] sm:$0xff]
        %v216 = vld [vmem:[%s210 + $0x10] sm:$0xff]
        %v217 = vld [vmem:[%s210 + $0x18] sm:$0xff]
        %v218 = vld [vmem:[%s210 + $0x20] sm:$0xf]
        %v219 = vld [vmem:[%s210 + $0x24] sm:$0xff]
        %v220 = vld [vmem:[%s210 + $0x2c] sm:$0xff]
        %v221 = vld [vmem:[%s210 + $0x34] sm:$0xff]
        %v222 = vld [vmem:[%s210 + $0x3c] sm:$0xff]
        %v223 = vld [vmem:[%s210 + $0x44] sm:$0xf]
        %v224 = vld [vmem:[%s210 + $0x48] sm:$0xff]
        %v225 = vld [vmem:[%s210 + $0x50] sm:$0xff]
        %v226 = vld [vmem:[%s210 + $0x58] sm:$0xff]
        %v227 = vld [vmem:[%s210 + $0x60] sm:$0xff]
        %v228 = vld [vmem:[%s210 + $0x68] sm:$0xf]
        %v229 = vld [vmem:[%s210 + $0x6c] sm:$0xff]
        %v230 = vld [vmem:[%s210 + $0x74] sm:$0xff]
        %v231 = vld [vmem:[%s210 + $0x7c] sm:$0xff]
        %v232 = vld [vmem:[%s210 + $0x84] sm:$0xff]
        %v233 = vld [vmem:[%s210 + $0x8c] sm:$0xf]
        %v234 = vld [vmem:[%s210 + $0x90] sm:$0xff]
        %v235 = vld [vmem:[%s210 + $0x98] sm:$0xff]
        %v236 = vld [vmem:[%s210 + $0xa0] sm:$0xff]
        %v237 = vld [vmem:[%s210 + $0xa8] sm:$0xff]
        %v238 = vld [vmem:[%s210 + $0xb0] sm:$0xf]
        %v239 = vld [vmem:[%s210 + $0xb4] sm:$0xff]
        %v240 = vld [vmem:[%s210 + $0xbc] sm:$0xff]
        %v241 = vld [vmem:[%s210 + $0xc4] sm:$0xff]
        %v242 = vld [vmem:[%s210 + $0xcc] sm:$0xff]
        %v243 = vld [vmem:[%s210 + $0xd4] sm:$0xf]
        %v244 = vld [vmem:[%s210 + $0xd8] sm:$0xff]
        %v245 = vld [vmem:[%s210 + $0xe0] sm:$0xff]
        %v246 = vld [vmem:[%s210 + $0xe8] sm:$0xff]
        %v247 = vld [vmem:[%s210 + $0xf0] sm:$0xff]
        %v248 = vld [vmem:[%s210 + $0xf8] sm:$0xf]
        %v249 = vld [vmem:[%s210 + $0xfc] sm:$0xff]
        %v250 = vld [vmem:[%s210 + $0x104] sm:$0xff]
        %v251 = vld [vmem:[%s210 + $0x10c] sm:$0xff]
        %v252 = vld [vmem:[%s210 + $0x114] sm:$0xff]
        %v253 = vld [vmem:[%s210 + $0x11c] sm:$0xf]
        %v254 = vld [vmem:[%s210 + $0x120] sm:$0xff]
        %v255 = vld [vmem:[%s210 + $0x128] sm:$0xff]
        %v256 = vld [vmem:[%s210 + $0x130] sm:$0xff]
        %v257 = vld [vmem:[%s210 + $0x138] sm:$0xff]
        %v258 = vld [vmem:[%s210 + $0x140] sm:$0xf]
        %v259 = vld [vmem:[%s210 + $0x144] sm:$0xff]
        %v260 = vld [vmem:[%s210 + $0x14c] sm:$0xff]
        %v261 = vld [vmem:[%s210 + $0x154] sm:$0xff]
        %v262 = vld [vmem:[%s210 + $0x15c] sm:$0xff]
        %v263 = vld [vmem:[%s210 + $0x164] sm:$0xf]
        %v264 = vld [vmem:[%s210 + $0x168] sm:$0xff]
        %v265 = vld [vmem:[%s210 + $0x170] sm:$0xff]
        %v266 = vld [vmem:[%s210 + $0x178] sm:$0xff]
        %v267 = vld [vmem:[%s210 + $0x180] sm:$0xff]
        %v268 = vld [vmem:[%s210 + $0x188] sm:$0xf]
        %v269 = vld [vmem:[%s210 + $0x18c] sm:$0xff]
        %v270 = vld [vmem:[%s210 + $0x194] sm:$0xff]
        %v271 = vld [vmem:[%s210 + $0x19c] sm:$0xff]
        %v272 = vld [vmem:[%s210 + $0x1a4] sm:$0xff]
        %v273 = vld [vmem:[%s210 + $0x1ac] sm:$0xf]
        %v274 = vld [vmem:[%s210 + $0x1b0] sm:$0xff]
        %v275 = vld [vmem:[%s210 + $0x1b8] sm:$0xff]
        %v276 = vld [vmem:[%s210 + $0x1c0] sm:$0xff]
        %v277 = vld [vmem:[%s210 + $0x1c8] sm:$0xff]
        %v278 = vld [vmem:[%s210 + $0x1d0] sm:$0xf]
        %v279 = vld [vmem:[%s210 + $0x1d4] sm:$0xff]
        %v280 = vld [vmem:[%s210 + $0x1dc] sm:$0xff]
        %v281 = vld [vmem:[%s210 + $0x1e4] sm:$0xff]
        %v282 = vld [vmem:[%s210 + $0x1ec] sm:$0xff]
        %v283 = vld [vmem:[%s210 + $0x1f4] sm:$0xf]
        %v284 = vld [vmem:[%s210 + $0x1f8] sm:$0xff]
        %v285 = vld [vmem:[%s210 + $0x200] sm:$0xff]
        %v286 = vld [vmem:[%s210 + $0x208] sm:$0xff]
        %v287 = vld [vmem:[%s210 + $0x210] sm:$0xff]
        %v288 = vld [vmem:[%s210 + $0x218] sm:$0xf]
        %v289 = vld [vmem:[%s210 + $0x21c] sm:$0xff]
        %v290 = vld [vmem:[%s210 + $0x224] sm:$0xff]
        %v291 = vld [vmem:[%s210 + $0x22c] sm:$0xff]
        %v292 = vld [vmem:[%s210 + $0x234] sm:$0xff]
        %v293 = vld [vmem:[%s210 + $0x23c] sm:$0xf]
        %v294 = vld [vmem:[%s210 + $0x240] sm:$0xff]
        %v295 = vld [vmem:[%s210 + $0x248] sm:$0xff]
        %v296 = vld [vmem:[%s210 + $0x250] sm:$0xff]
        %v297 = vld [vmem:[%s210 + $0x258] sm:$0xff]
        %v298 = vld [vmem:[%s210 + $0x260] sm:$0xf]
        %v299 = vld [vmem:[%s210 + $0x264] sm:$0xff]
        %v300 = vld [vmem:[%s210 + $0x26c] sm:$0xff]
        %v301 = vld [vmem:[%s210 + $0x274] sm:$0xff]
        %v302 = vld [vmem:[%s210 + $0x27c] sm:$0xff]
        %v303 = vld [vmem:[%s210 + $0x284] sm:$0xf]
        %v304 = vld [vmem:[%s210 + $0x288] sm:$0xff]
        %v305 = vld [vmem:[%s210 + $0x290] sm:$0xff]
        %v306 = vld [vmem:[%s210 + $0x298] sm:$0xff]
        %v307 = vld [vmem:[%s210 + $0x2a0] sm:$0xff]
        %v308 = vld [vmem:[%s210 + $0x2a8] sm:$0xf]
        %v309 = vld [vmem:[%s210 + $0x2ac] sm:$0xff]
        %v310 = vld [vmem:[%s210 + $0x2b4] sm:$0xff]
        %v311 = vld [vmem:[%s210 + $0x2bc] sm:$0xff]
        %v312 = vld [vmem:[%s210 + $0x2c4] sm:$0xff]
        %v313 = vld [vmem:[%s210 + $0x2cc] sm:$0xf]
        %v314 = vld [vmem:[%s210 + $0x2d0] sm:$0xff]
        %v315 = vld [vmem:[%s210 + $0x2d8] sm:$0xff]
        %v316 = vld [vmem:[%s210 + $0x2e0] sm:$0xff]
        %v317 = vld [vmem:[%s210 + $0x2e8] sm:$0xff]
        %v318 = vld [vmem:[%s210 + $0x2f0] sm:$0xf]
        %v319 = vld [vmem:[%s210 + $0x2f4] sm:$0xff]
        %v320 = vld [vmem:[%s210 + $0x2fc] sm:$0xff]
        %v321 = vld [vmem:[%s210 + $0x304] sm:$0xff]
        %v322 = vld [vmem:[%s210 + $0x30c] sm:$0xff]
        %v323 = vld [vmem:[%s210 + $0x314] sm:$0xf]
        %v324 = vld [vmem:[%s210 + $0x318] sm:$0xff]
        %v325 = vld [vmem:[%s210 + $0x320] sm:$0xff]
        %v326 = vld [vmem:[%s210 + $0x328] sm:$0xff]
        %v327 = vld [vmem:[%s210 + $0x330] sm:$0xff]
        %v328 = vld [vmem:[%s210 + $0x338] sm:$0xf]
        %v329 = vld [vmem:[%s210 + $0x33c] sm:$0xff]
        %v330 = vld [vmem:[%s210 + $0x344] sm:$0xff]
        %v331 = vld [vmem:[%s210 + $0x34c] sm:$0xff]
        %v332 = vld [vmem:[%s210 + $0x354] sm:$0xff]
        %v333 = vld [vmem:[%s210 + $0x35c] sm:$0xf]
        %v334 = vld [vmem:[%s210 + $0x360] sm:$0xff]
        %v335 = vld [vmem:[%s210 + $0x368] sm:$0xff]
        %v336 = vld [vmem:[%s210 + $0x370] sm:$0xff]
        %v337 = vld [vmem:[%s210 + $0x378] sm:$0xff]
        %v338 = vld [vmem:[%s210 + $0x380] sm:$0xf]
        %v339 = vld [vmem:[%s210 + $0x384] sm:$0xff]
        %v340 = vld [vmem:[%s210 + $0x38c] sm:$0xff]
        %v341 = vld [vmem:[%s210 + $0x394] sm:$0xff]
        %v342 = vld [vmem:[%s210 + $0x39c] sm:$0xff]
        %v343 = vld [vmem:[%s210 + $0x3a4] sm:$0xf]
        %v344 = vld [vmem:[%s210 + $0x3a8] sm:$0xff]
        %v345 = vld [vmem:[%s210 + $0x3b0] sm:$0xff]
        %v346 = vld [vmem:[%s210 + $0x3b8] sm:$0xff]
        %v347 = vld [vmem:[%s210 + $0x3c0] sm:$0xff]
        %v348 = vld [vmem:[%s210 + $0x3c8] sm:$0xf]
        %v349 = vld [vmem:[%s210 + $0x3cc] sm:$0xff]
        %v350 = vld [vmem:[%s210 + $0x3d4] sm:$0xff]
        %v351 = vld [vmem:[%s210 + $0x3dc] sm:$0xff]
        %v352 = vld [vmem:[%s210 + $0x3e4] sm:$0xff]
        %v353 = vld [vmem:[%s210 + $0x3ec] sm:$0xf]
        %v354 = vld [vmem:[%s210 + $0x3f0] sm:$0xff]
        %v355 = vld [vmem:[%s210 + $0x3f8] sm:$0xff]
        %v356 = vld [vmem:[%s210 + $0x400] sm:$0xff]
        %v357 = vld [vmem:[%s210 + $0x408] sm:$0xff]
        %v358 = vld [vmem:[%s210 + $0x410] sm:$0xf]
        %v359 = vld [vmem:[%s210 + $0x414] sm:$0xff]
        %v360 = vld [vmem:[%s210 + $0x41c] sm:$0xff]
        %v361 = vld [vmem:[%s210 + $0x424] sm:$0xff]
        %v362 = vld [vmem:[%s210 + $0x42c] sm:$0xff]
        %v363 = vld [vmem:[%s210 + $0x434] sm:$0xf]
        %v364 = vld [vmem:[%s210 + $0x438] sm:$0xff]
        %v365 = vld [vmem:[%s210 + $0x440] sm:$0xff]
        %v366 = vld [vmem:[%s210 + $0x448] sm:$0xff]
        %v367 = vld [vmem:[%s210 + $0x450] sm:$0xff]
        %v368 = vld [vmem:[%s210 + $0x458] sm:$0xf]
        %v369 = vld [vmem:[%s210 + $0x45c] sm:$0xff]
        %v370 = vld [vmem:[%s210 + $0x464] sm:$0xff]
        %v371 = vld [vmem:[%s210 + $0x46c] sm:$0xff]
        %v372 = vld [vmem:[%s210 + $0x474] sm:$0xff]
        %v373 = vld [vmem:[%s210 + $0x47c] sm:$0xf]
        %v374 = vld [vmem:[%s1] sm:$0xf]
        %v375 = vld [vmem:[%s1 + $0x4] sm:$0xf]
        %v376 = vld [vmem:[%s1 + $0x8] sm:$0xf]
        %v377 = vld [vmem:[%s1 + $0xc] sm:$0xf]
        %v378 = vld [vmem:[%s1 + $0x10] sm:$0xf]
        %v379 = vld [vmem:[%s1 + $0x14] sm:$0xf]
        %v380 = vld [vmem:[%s1 + $0x18] sm:$0xf]
        %v381 = vld [vmem:[%s1 + $0x1c] sm:$0xf]
        %v382 = vld [vmem:[%s1 + $0x20] sm:$0xf]
        %v383 = vld [vmem:[%s1 + $0x24] sm:$0xf]
        %v384 = vld [vmem:[%s1 + $0x28] sm:$0xf]
        %v385 = vld [vmem:[%s1 + $0x2c] sm:$0xf]
        %v386 = vld [vmem:[%s1 + $0x30] sm:$0xf]
        %v387 = vld [vmem:[%s1 + $0x34] sm:$0xf]
        %v388 = vld [vmem:[%s1 + $0x38] sm:$0xf]
        %v389 = vld [vmem:[%s1 + $0x3c] sm:$0xf]
        %v390 = vld [vmem:[%s1 + $0x40] sm:$0xf]
        %v391 = vld [vmem:[%s1 + $0x44] sm:$0xf]
        %v392 = vld [vmem:[%s1 + $0x48] sm:$0xf]
        %v393 = vld [vmem:[%s1 + $0x4c] sm:$0xf]
        %v394 = vld [vmem:[%s1 + $0x50] sm:$0xf]
        %v395 = vld [vmem:[%s1 + $0x54] sm:$0xf]
        %v396 = vld [vmem:[%s1 + $0x58] sm:$0xf]
        %v397 = vld [vmem:[%s1 + $0x5c] sm:$0xf]
        %v398 = vld [vmem:[%s1 + $0x60] sm:$0xf]
        %v399 = vld [vmem:[%s1 + $0x64] sm:$0xf]
        %v400 = vld [vmem:[%s1 + $0x68] sm:$0xf]
        %v401 = vld [vmem:[%s1 + $0x6c] sm:$0xf]
        %v402 = vld [vmem:[%s1 + $0x70] sm:$0xf]
        %v403 = vld [vmem:[%s1 + $0x74] sm:$0xf]
        %v404 = vld [vmem:[%s1 + $0x78] sm:$0xf]
        %v405 = vld [vmem:[%s1 + $0x7c] sm:$0xf]
        %v406 = vld [vmem:[%s1 + $0x80] sm:$0xf]
        %v407 = vld [vmem:[%s1 + $0x84] sm:$0xf]
        %v408 = vld [vmem:[%s1 + $0x88] sm:$0xf]
        %v409 = vld [vmem:[%s1 + $0x8c] sm:$0xf]
        %v410 = vld [vmem:[%s1 + $0x90] sm:$0xf]
        %v411 = vld [vmem:[%s1 + $0x94] sm:$0xf]
        %v412 = vld [vmem:[%s1 + $0x98] sm:$0xf]
        %v413 = vld [vmem:[%s1 + $0x9c] sm:$0xf]
        %v414 = vld [vmem:[%s1 + $0xa0] sm:$0xf]
        %v415 = vld [vmem:[%s1 + $0xa4] sm:$0xf]
        %v416 = vld [vmem:[%s1 + $0xa8] sm:$0xf]
        %v417 = vld [vmem:[%s1 + $0xac] sm:$0xf]
        %v418 = vld [vmem:[%s1 + $0xb0] sm:$0xf]
        %v419 = vld [vmem:[%s1 + $0xb4] sm:$0xf]
        %v420 = vld [vmem:[%s1 + $0xb8] sm:$0xf]
        %v421 = vld [vmem:[%s1 + $0xbc] sm:$0xf]
        %v422 = vld [vmem:[%s1 + $0xc0] sm:$0xf]
        %v423 = vld [vmem:[%s1 + $0xc4] sm:$0xf]
        %v424 = vld [vmem:[%s1 + $0xc8] sm:$0xf]
        %v425 = vld [vmem:[%s1 + $0xcc] sm:$0xf]
        %v426 = vld [vmem:[%s1 + $0xd0] sm:$0xf]
        %v427 = vld [vmem:[%s1 + $0xd4] sm:$0xf]
        %v428 = vld [vmem:[%s1 + $0xd8] sm:$0xf]
        %v429 = vld [vmem:[%s1 + $0xdc] sm:$0xf]
        %v430 = vld [vmem:[%s1 + $0xe0] sm:$0xf]
        %v431 = vld [vmem:[%s1 + $0xe4] sm:$0xf]
        %v432 = vld [vmem:[%s1 + $0xe8] sm:$0xf]
        %v433 = vld [vmem:[%s1 + $0xec] sm:$0xf]
        %v434 = vld [vmem:[%s1 + $0xf0] sm:$0xf]
        %v435 = vld [vmem:[%s1 + $0xf4] sm:$0xf]
        %v436 = vld [vmem:[%s1 + $0xf8] sm:$0xf]
        %v437 = vld [vmem:[%s1 + $0xfc] sm:$0xf]
        %v438 = vld [vmem:[%s1 + $0x100] sm:$0xf]
        %v439 = vld [vmem:[%s1 + $0x104] sm:$0xf]
        %v440 = vld [vmem:[%s1 + $0x108] sm:$0xf]
        %v441 = vld [vmem:[%s1 + $0x10c] sm:$0xf]
        %v442 = vld [vmem:[%s1 + $0x110] sm:$0xf]
        %v443 = vld [vmem:[%s1 + $0x114] sm:$0xf]
        %v444 = vld [vmem:[%s1 + $0x118] sm:$0xf]
        %v445 = vld [vmem:[%s1 + $0x11c] sm:$0xf]
        %v446 = vld [vmem:[%s1 + $0x120] sm:$0xf]
        %v447 = vld [vmem:[%s1 + $0x124] sm:$0xf]
        %v448 = vld [vmem:[%s1 + $0x128] sm:$0xf]
        %v449 = vld [vmem:[%s1 + $0x12c] sm:$0xf]
        %v450 = vld [vmem:[%s1 + $0x130] sm:$0xf]
        %v451 = vld [vmem:[%s1 + $0x134] sm:$0xf]
        %v452 = vld [vmem:[%s1 + $0x138] sm:$0xf]
        %v453 = vld [vmem:[%s1 + $0x13c] sm:$0xf]
        %v454 = vld [vmem:[%s1 + $0x140] sm:$0xf]
        %v455 = vld [vmem:[%s1 + $0x144] sm:$0xf]
        %v456 = vld [vmem:[%s1 + $0x148] sm:$0xf]
        %v457 = vld [vmem:[%s1 + $0x14c] sm:$0xf]
        %v458 = vld [vmem:[%s1 + $0x150] sm:$0xf]
        %v459 = vld [vmem:[%s1 + $0x154] sm:$0xf]
        %v460 = vld [vmem:[%s1 + $0x158] sm:$0xf]
        %v461 = vld [vmem:[%s1 + $0x15c] sm:$0xf]
        %v462 = vld [vmem:[%s1 + $0x160] sm:$0xf]
        %v463 = vld [vmem:[%s1 + $0x164] sm:$0xf]
        %v464 = vld [vmem:[%s1 + $0x168] sm:$0xf]
        %v465 = vld [vmem:[%s1 + $0x16c] sm:$0xf]
        %v466 = vld [vmem:[%s1 + $0x170] sm:$0xf]
        %v467 = vld [vmem:[%s1 + $0x174] sm:$0xf]
        %v468 = vld [vmem:[%s1 + $0x178] sm:$0xf]
        %v469 = vld [vmem:[%s1 + $0x17c] sm:$0xf]
        %v470 = vld [vmem:[%s1 + $0x180] sm:$0xf]
        %v471 = vld [vmem:[%s1 + $0x184] sm:$0xf]
        %v472 = vld [vmem:[%s1 + $0x188] sm:$0xf]
        %v473 = vld [vmem:[%s1 + $0x18c] sm:$0xf]
        %v474 = vld [vmem:[%s1 + $0x190] sm:$0xf]
        %v475 = vld [vmem:[%s1 + $0x194] sm:$0xf]
        %v476 = vld [vmem:[%s1 + $0x198] sm:$0xf]
        %v477 = vld [vmem:[%s1 + $0x19c] sm:$0xf]
        %v478 = vld [vmem:[%s1 + $0x1a0] sm:$0xf]
        %v479 = vld [vmem:[%s1 + $0x1a4] sm:$0xf]
        %v480 = vld [vmem:[%s1 + $0x1a8] sm:$0xf]
        %v481 = vld [vmem:[%s1 + $0x1ac] sm:$0xf]
        %v482 = vld [vmem:[%s1 + $0x1b0] sm:$0xf]
        %v483 = vld [vmem:[%s1 + $0x1b4] sm:$0xf]
        %v484 = vld [vmem:[%s1 + $0x1b8] sm:$0xf]
        %v485 = vld [vmem:[%s1 + $0x1bc] sm:$0xf]
        %v486 = vld [vmem:[%s1 + $0x1c0] sm:$0xf]
        %v487 = vld [vmem:[%s1 + $0x1c4] sm:$0xf]
        %v488 = vld [vmem:[%s1 + $0x1c8] sm:$0xf]
        %v489 = vld [vmem:[%s1 + $0x1cc] sm:$0xf]
        %v490 = vld [vmem:[%s1 + $0x1d0] sm:$0xf]
        %v491 = vld [vmem:[%s1 + $0x1d4] sm:$0xf]
        %v492 = vld [vmem:[%s1 + $0x1d8] sm:$0xf]
        %v493 = vld [vmem:[%s1 + $0x1dc] sm:$0xf]
        %v494 = vld [vmem:[%s1 + $0x1e0] sm:$0xf]
        %v495 = vld [vmem:[%s1 + $0x1e4] sm:$0xf]
        %v496 = vld [vmem:[%s1 + $0x1e8] sm:$0xf]
        %v497 = vld [vmem:[%s1 + $0x1ec] sm:$0xf]
        %v498 = vld [vmem:[%s1 + $0x1f0] sm:$0xf]
        %v499 = vld [vmem:[%s1 + $0x1f4] sm:$0xf]
        %v500 = vld [vmem:[%s1 + $0x1f8] sm:$0xf]
        %v501 = vld [vmem:[%s1 + $0x1fc] sm:$0xf]
        %v502 = vld [vmem:[%s1 + $0x200] sm:$0xf]
        %v503 = vld [vmem:[%s1 + $0x204] sm:$0xf]
        %v504 = vld [vmem:[%s1 + $0x208] sm:$0xf]
        %v505 = vld [vmem:[%s1 + $0x20c] sm:$0xf]
        %v506 = vld [vmem:[%s1 + $0x210] sm:$0xf]
        %v507 = vld [vmem:[%s1 + $0x214] sm:$0xf]
        %v508 = vld [vmem:[%s1 + $0x218] sm:$0xf]
        %v509 = vld [vmem:[%s1 + $0x21c] sm:$0xf]
        %v510 = vld [vmem:[%s1 + $0x220] sm:$0xf]
        %v511 = vld [vmem:[%s1 + $0x224] sm:$0xf]
        %v512 = vld [vmem:[%s1 + $0x228] sm:$0xf]
        %v513 = vld [vmem:[%s1 + $0x22c] sm:$0xf]
        %v514 = vld [vmem:[%s1 + $0x230] sm:$0xf]
        %v515 = vld [vmem:[%s1 + $0x234] sm:$0xf]
        %v516 = vld [vmem:[%s1 + $0x238] sm:$0xf]
        %v517 = vld [vmem:[%s1 + $0x23c] sm:$0xf]
        %v518 = vld [vmem:[%s2] sm:$0x1]
        %v520 = vperm.slane %v518, 0
        %v682 = vunpack.c.l.b16 %v214
        %v683 = vunpack.c.h.b16 %v214
        %v684 = vunpack.c.l.b16 %v215
        %v685 = vunpack.c.h.b16 %v215
        %v686 = vunpack.c.l.b16 %v216
        %v687 = vunpack.c.h.b16 %v216
        %v688 = vunpack.c.l.b16 %v217
        %v689 = vunpack.c.h.b16 %v217
        %v690 = vunpack.c.l.b16 %v218
        %v691 = vunpack.c.l.b16 %v219
        %v692 = vunpack.c.h.b16 %v219
        %v693 = vunpack.c.l.b16 %v220
        %v694 = vunpack.c.h.b16 %v220
        %v695 = vunpack.c.l.b16 %v221
        %v696 = vunpack.c.h.b16 %v221
        %v697 = vunpack.c.l.b16 %v222
        %v698 = vunpack.c.h.b16 %v222
        %v699 = vunpack.c.l.b16 %v223
        %v700 = vunpack.c.l.b16 %v224
        %v701 = vunpack.c.h.b16 %v224
        %v702 = vunpack.c.l.b16 %v225
        %v703 = vunpack.c.h.b16 %v225
        %v704 = vunpack.c.l.b16 %v226
        %v705 = vunpack.c.h.b16 %v226
        %v706 = vunpack.c.l.b16 %v227
        %v707 = vunpack.c.h.b16 %v227
        %v708 = vunpack.c.l.b16 %v228
        %v709 = vunpack.c.l.b16 %v229
        %v710 = vunpack.c.h.b16 %v229
        %v711 = vunpack.c.l.b16 %v230
        %v712 = vunpack.c.h.b16 %v230
        %v713 = vunpack.c.l.b16 %v231
        %v714 = vunpack.c.h.b16 %v231
        %v715 = vunpack.c.l.b16 %v232
        %v716 = vunpack.c.h.b16 %v232
        %v717 = vunpack.c.l.b16 %v233
        %v718 = vunpack.c.l.b16 %v234
        %v719 = vunpack.c.h.b16 %v234
        %v720 = vunpack.c.l.b16 %v235
        %v721 = vunpack.c.h.b16 %v235
        %v722 = vunpack.c.l.b16 %v236
        %v723 = vunpack.c.h.b16 %v236
        %v724 = vunpack.c.l.b16 %v237
        %v725 = vunpack.c.h.b16 %v237
        %v726 = vunpack.c.l.b16 %v238
        %v727 = vunpack.c.l.b16 %v239
        %v728 = vunpack.c.h.b16 %v239
        %v729 = vunpack.c.l.b16 %v240
        %v730 = vunpack.c.h.b16 %v240
        %v731 = vunpack.c.l.b16 %v241
        %v732 = vunpack.c.h.b16 %v241
        %v733 = vunpack.c.l.b16 %v242
        %v734 = vunpack.c.h.b16 %v242
        %v735 = vunpack.c.l.b16 %v243
        %v736 = vunpack.c.l.b16 %v244
        %v737 = vunpack.c.h.b16 %v244
        %v738 = vunpack.c.l.b16 %v245
        %v739 = vunpack.c.h.b16 %v245
        %v740 = vunpack.c.l.b16 %v246
        %v741 = vunpack.c.h.b16 %v246
        %v742 = vunpack.c.l.b16 %v247
        %v743 = vunpack.c.h.b16 %v247
        %v744 = vunpack.c.l.b16 %v248
        %v745 = vunpack.c.l.b16 %v249
        %v746 = vunpack.c.h.b16 %v249
        %v747 = vunpack.c.l.b16 %v250
        %v748 = vunpack.c.h.b16 %v250
        %v749 = vunpack.c.l.b16 %v251
        %v750 = vunpack.c.h.b16 %v251
        %v751 = vunpack.c.l.b16 %v252
        %v752 = vunpack.c.h.b16 %v252
        %v753 = vunpack.c.l.b16 %v253
        %v754 = vunpack.c.l.b16 %v254
        %v755 = vunpack.c.h.b16 %v254
        %v756 = vunpack.c.l.b16 %v255
        %v757 = vunpack.c.h.b16 %v255
        %v758 = vunpack.c.l.b16 %v256
        %v759 = vunpack.c.h.b16 %v256
        %v760 = vunpack.c.l.b16 %v257
        %v761 = vunpack.c.h.b16 %v257
        %v762 = vunpack.c.l.b16 %v258
        %v763 = vunpack.c.l.b16 %v259
        %v764 = vunpack.c.h.b16 %v259
        %v765 = vunpack.c.l.b16 %v260
        %v766 = vunpack.c.h.b16 %v260
        %v767 = vunpack.c.l.b16 %v261
        %v768 = vunpack.c.h.b16 %v261
        %v769 = vunpack.c.l.b16 %v262
        %v770 = vunpack.c.h.b16 %v262
        %v771 = vunpack.c.l.b16 %v263
        %v772 = vunpack.c.l.b16 %v264
        %v773 = vunpack.c.h.b16 %v264
        %v774 = vunpack.c.l.b16 %v265
        %v775 = vunpack.c.h.b16 %v265
        %v776 = vunpack.c.l.b16 %v266
        %v777 = vunpack.c.h.b16 %v266
        %v778 = vunpack.c.l.b16 %v267
        %v779 = vunpack.c.h.b16 %v267
        %v780 = vunpack.c.l.b16 %v268
        %v781 = vunpack.c.l.b16 %v269
        %v782 = vunpack.c.h.b16 %v269
        %v783 = vunpack.c.l.b16 %v270
        %v784 = vunpack.c.h.b16 %v270
        %v785 = vunpack.c.l.b16 %v271
        %v786 = vunpack.c.h.b16 %v271
        %v787 = vunpack.c.l.b16 %v272
        %v788 = vunpack.c.h.b16 %v272
        %v789 = vunpack.c.l.b16 %v273
        %v790 = vunpack.c.l.b16 %v274
        %v791 = vunpack.c.h.b16 %v274
        %v792 = vunpack.c.l.b16 %v275
        %v793 = vunpack.c.h.b16 %v275
        %v794 = vunpack.c.l.b16 %v276
        %v795 = vunpack.c.h.b16 %v276
        %v796 = vunpack.c.l.b16 %v277
        %v797 = vunpack.c.h.b16 %v277
        %v798 = vunpack.c.l.b16 %v278
        %v799 = vunpack.c.l.b16 %v279
        %v800 = vunpack.c.h.b16 %v279
        %v801 = vunpack.c.l.b16 %v280
        %v802 = vunpack.c.h.b16 %v280
        %v803 = vunpack.c.l.b16 %v281
        %v804 = vunpack.c.h.b16 %v281
        %v805 = vunpack.c.l.b16 %v282
        %v806 = vunpack.c.h.b16 %v282
        %v807 = vunpack.c.l.b16 %v283
        %v808 = vunpack.c.l.b16 %v284
        %v809 = vunpack.c.h.b16 %v284
        %v810 = vunpack.c.l.b16 %v285
        %v811 = vunpack.c.h.b16 %v285
        %v812 = vunpack.c.l.b16 %v286
        %v813 = vunpack.c.h.b16 %v286
        %v814 = vunpack.c.l.b16 %v287
        %v815 = vunpack.c.h.b16 %v287
        %v816 = vunpack.c.l.b16 %v288
        %v817 = vunpack.c.l.b16 %v289
        %v818 = vunpack.c.h.b16 %v289
        %v819 = vunpack.c.l.b16 %v290
        %v820 = vunpack.c.h.b16 %v290
        %v821 = vunpack.c.l.b16 %v291
        %v822 = vunpack.c.h.b16 %v291
        %v823 = vunpack.c.l.b16 %v292
        %v824 = vunpack.c.h.b16 %v292
        %v825 = vunpack.c.l.b16 %v293
        %v826 = vunpack.c.l.b16 %v294
        %v827 = vunpack.c.h.b16 %v294
        %v828 = vunpack.c.l.b16 %v295
        %v829 = vunpack.c.h.b16 %v295
        %v830 = vunpack.c.l.b16 %v296
        %v831 = vunpack.c.h.b16 %v296
        %v832 = vunpack.c.l.b16 %v297
        %v833 = vunpack.c.h.b16 %v297
        %v834 = vunpack.c.l.b16 %v298
        %v835 = vunpack.c.l.b16 %v299
        %v836 = vunpack.c.h.b16 %v299
        %v837 = vunpack.c.l.b16 %v300
        %v838 = vunpack.c.h.b16 %v300
        %v839 = vunpack.c.l.b16 %v301
        %v840 = vunpack.c.h.b16 %v301
        %v841 = vunpack.c.l.b16 %v302
        %v842 = vunpack.c.h.b16 %v302
        %v843 = vunpack.c.l.b16 %v303
        %v844 = vunpack.c.l.b16 %v304
        %v845 = vunpack.c.h.b16 %v304
        %v846 = vunpack.c.l.b16 %v305
        %v847 = vunpack.c.h.b16 %v305
        %v848 = vunpack.c.l.b16 %v306
        %v849 = vunpack.c.h.b16 %v306
        %v850 = vunpack.c.l.b16 %v307
        %v851 = vunpack.c.h.b16 %v307
        %v852 = vunpack.c.l.b16 %v308
        %v853 = vunpack.c.l.b16 %v309
        %v854 = vunpack.c.h.b16 %v309
        %v855 = vunpack.c.l.b16 %v310
        %v856 = vunpack.c.h.b16 %v310
        %v857 = vunpack.c.l.b16 %v311
        %v858 = vunpack.c.h.b16 %v311
        %v859 = vunpack.c.l.b16 %v312
        %v860 = vunpack.c.h.b16 %v312
        %v861 = vunpack.c.l.b16 %v313
        %v862 = vunpack.c.l.b16 %v314
        %v863 = vunpack.c.h.b16 %v314
        %v864 = vunpack.c.l.b16 %v315
        %v865 = vunpack.c.h.b16 %v315
        %v866 = vunpack.c.l.b16 %v316
        %v867 = vunpack.c.h.b16 %v316
        %v868 = vunpack.c.l.b16 %v317
        %v869 = vunpack.c.h.b16 %v317
        %v870 = vunpack.c.l.b16 %v318
        %v871 = vunpack.c.l.b16 %v319
        %v872 = vunpack.c.h.b16 %v319
        %v873 = vunpack.c.l.b16 %v320
        %v874 = vunpack.c.h.b16 %v320
        %v875 = vunpack.c.l.b16 %v321
        %v876 = vunpack.c.h.b16 %v321
        %v877 = vunpack.c.l.b16 %v322
        %v878 = vunpack.c.h.b16 %v322
        %v879 = vunpack.c.l.b16 %v323
        %v880 = vunpack.c.l.b16 %v324
        %v881 = vunpack.c.h.b16 %v324
        %v882 = vunpack.c.l.b16 %v325
        %v883 = vunpack.c.h.b16 %v325
        %v884 = vunpack.c.l.b16 %v326
        %v885 = vunpack.c.h.b16 %v326
        %v886 = vunpack.c.l.b16 %v327
        %v887 = vunpack.c.h.b16 %v327
        %v888 = vunpack.c.l.b16 %v328
        %v889 = vunpack.c.l.b16 %v329
        %v890 = vunpack.c.h.b16 %v329
        %v891 = vunpack.c.l.b16 %v330
        %v892 = vunpack.c.h.b16 %v330
        %v893 = vunpack.c.l.b16 %v331
        %v894 = vunpack.c.h.b16 %v331
        %v895 = vunpack.c.l.b16 %v332
        %v896 = vunpack.c.h.b16 %v332
        %v897 = vunpack.c.l.b16 %v333
        %v898 = vunpack.c.l.b16 %v334
        %v899 = vunpack.c.h.b16 %v334
        %v900 = vunpack.c.l.b16 %v335
        %v901 = vunpack.c.h.b16 %v335
        %v902 = vunpack.c.l.b16 %v336
        %v903 = vunpack.c.h.b16 %v336
        %v904 = vunpack.c.l.b16 %v337
        %v905 = vunpack.c.h.b16 %v337
        %v906 = vunpack.c.l.b16 %v338
        %v907 = vunpack.c.l.b16 %v339
        %v908 = vunpack.c.h.b16 %v339
        %v909 = vunpack.c.l.b16 %v340
        %v910 = vunpack.c.h.b16 %v340
        %v911 = vunpack.c.l.b16 %v341
        %v912 = vunpack.c.h.b16 %v341
        %v913 = vunpack.c.l.b16 %v342
        %v914 = vunpack.c.h.b16 %v342
        %v915 = vunpack.c.l.b16 %v343
        %v916 = vunpack.c.l.b16 %v344
        %v917 = vunpack.c.h.b16 %v344
        %v918 = vunpack.c.l.b16 %v345
        %v919 = vunpack.c.h.b16 %v345
        %v920 = vunpack.c.l.b16 %v346
        %v921 = vunpack.c.h.b16 %v346
        %v922 = vunpack.c.l.b16 %v347
        %v923 = vunpack.c.h.b16 %v347
        %v924 = vunpack.c.l.b16 %v348
        %v925 = vunpack.c.l.b16 %v349
        %v926 = vunpack.c.h.b16 %v349
        %v927 = vunpack.c.l.b16 %v350
        %v928 = vunpack.c.h.b16 %v350
        %v929 = vunpack.c.l.b16 %v351
        %v930 = vunpack.c.h.b16 %v351
        %v931 = vunpack.c.l.b16 %v352
        %v932 = vunpack.c.h.b16 %v352
        %v933 = vunpack.c.l.b16 %v353
        %v934 = vunpack.c.l.b16 %v354
        %v935 = vunpack.c.h.b16 %v354
        %v936 = vunpack.c.l.b16 %v355
        %v937 = vunpack.c.h.b16 %v355
        %v938 = vunpack.c.l.b16 %v356
        %v939 = vunpack.c.h.b16 %v356
        %v940 = vunpack.c.l.b16 %v357
        %v941 = vunpack.c.h.b16 %v357
        %v942 = vunpack.c.l.b16 %v358
        %v943 = vunpack.c.l.b16 %v359
        %v944 = vunpack.c.h.b16 %v359
        %v945 = vunpack.c.l.b16 %v360
        %v946 = vunpack.c.h.b16 %v360
        %v947 = vunpack.c.l.b16 %v361
        %v948 = vunpack.c.h.b16 %v361
        %v949 = vunpack.c.l.b16 %v362
        %v950 = vunpack.c.h.b16 %v362
        %v951 = vunpack.c.l.b16 %v363
        %v952 = vunpack.c.l.b16 %v364
        %v953 = vunpack.c.h.b16 %v364
        %v954 = vunpack.c.l.b16 %v365
        %v955 = vunpack.c.h.b16 %v365
        %v956 = vunpack.c.l.b16 %v366
        %v957 = vunpack.c.h.b16 %v366
        %v958 = vunpack.c.l.b16 %v367
        %v959 = vunpack.c.h.b16 %v367
        %v960 = vunpack.c.l.b16 %v368
        %v961 = vunpack.c.l.b16 %v369
        %v962 = vunpack.c.h.b16 %v369
        %v963 = vunpack.c.l.b16 %v370
        %v964 = vunpack.c.h.b16 %v370
        %v965 = vunpack.c.l.b16 %v371
        %v966 = vunpack.c.h.b16 %v371
        %v967 = vunpack.c.l.b16 %v372
        %v968 = vunpack.c.h.b16 %v372
        %v969 = vunpack.c.l.b16 %v373
        %v970 = vpack.c.b16 %v691, %v682
        %v971 = vpack.c.b16 %v692, %v683
        %v972 = vpack.c.b16 %v693, %v684
        %v973 = vpack.c.b16 %v694, %v685
        %v974 = vpack.c.b16 %v695, %v686
        %v975 = vpack.c.b16 %v696, %v687
        %v976 = vpack.c.b16 %v697, %v688
        %v977 = vpack.c.b16 %v698, %v689
        %v978 = vpack.c.b16 %v699, %v690
        %v979 = vpack.c.b16 %v709, %v700
        %v980 = vpack.c.b16 %v710, %v701
        %v981 = vpack.c.b16 %v711, %v702
        %v982 = vpack.c.b16 %v712, %v703
        %v983 = vpack.c.b16 %v713, %v704
        %v984 = vpack.c.b16 %v714, %v705
        %v985 = vpack.c.b16 %v715, %v706
        %v986 = vpack.c.b16 %v716, %v707
        %v987 = vpack.c.b16 %v717, %v708
        %v988 = vpack.c.b16 %v727, %v718
        %v989 = vpack.c.b16 %v728, %v719
        %v990 = vpack.c.b16 %v729, %v720
        %v991 = vpack.c.b16 %v730, %v721
        %v992 = vpack.c.b16 %v731, %v722
        %v993 = vpack.c.b16 %v732, %v723
        %v994 = vpack.c.b16 %v733, %v724
        %v995 = vpack.c.b16 %v734, %v725
        %v996 = vpack.c.b16 %v735, %v726
        %v997 = vpack.c.b16 %v745, %v736
        %v998 = vpack.c.b16 %v746, %v737
        %v999 = vpack.c.b16 %v747, %v738
        %v1000 = vpack.c.b16 %v748, %v739
        %v1001 = vpack.c.b16 %v749, %v740
        %v1002 = vpack.c.b16 %v750, %v741
        %v1003 = vpack.c.b16 %v751, %v742
        %v1004 = vpack.c.b16 %v752, %v743
        %v1005 = vpack.c.b16 %v753, %v744
        %v1006 = vpack.c.b16 %v763, %v754
        %v1007 = vpack.c.b16 %v764, %v755
        %v1008 = vpack.c.b16 %v765, %v756
        %v1009 = vpack.c.b16 %v766, %v757
        %v1010 = vpack.c.b16 %v767, %v758
        %v1011 = vpack.c.b16 %v768, %v759
        %v1012 = vpack.c.b16 %v769, %v760
        %v1013 = vpack.c.b16 %v770, %v761
        %v1014 = vpack.c.b16 %v771, %v762
        %v1015 = vpack.c.b16 %v781, %v772
        %v1016 = vpack.c.b16 %v782, %v773
        %v1017 = vpack.c.b16 %v783, %v774
        %v1018 = vpack.c.b16 %v784, %v775
        %v1019 = vpack.c.b16 %v785, %v776
        %v1020 = vpack.c.b16 %v786, %v777
        %v1021 = vpack.c.b16 %v787, %v778
        %v1022 = vpack.c.b16 %v788, %v779
        %v1023 = vpack.c.b16 %v789, %v780
        %v1024 = vpack.c.b16 %v799, %v790
        %v1025 = vpack.c.b16 %v800, %v791
        %v1026 = vpack.c.b16 %v801, %v792
        %v1027 = vpack.c.b16 %v802, %v793
        %v1028 = vpack.c.b16 %v803, %v794
        %v1029 = vpack.c.b16 %v804, %v795
        %v1030 = vpack.c.b16 %v805, %v796
        %v1031 = vpack.c.b16 %v806, %v797
        %v1032 = vpack.c.b16 %v807, %v798
        %v1033 = vpack.c.b16 %v817, %v808
        %v1034 = vpack.c.b16 %v818, %v809
        %v1035 = vpack.c.b16 %v819, %v810
        %v1036 = vpack.c.b16 %v820, %v811
        %v1037 = vpack.c.b16 %v821, %v812
        %v1038 = vpack.c.b16 %v822, %v813
        %v1039 = vpack.c.b16 %v823, %v814
        %v1040 = vpack.c.b16 %v824, %v815
        %v1041 = vpack.c.b16 %v825, %v816
        %v1042 = vpack.c.b16 %v835, %v826
        %v1043 = vpack.c.b16 %v836, %v827
        %v1044 = vpack.c.b16 %v837, %v828
        %v1045 = vpack.c.b16 %v838, %v829
        %v1046 = vpack.c.b16 %v839, %v830
        %v1047 = vpack.c.b16 %v840, %v831
        %v1048 = vpack.c.b16 %v841, %v832
        %v1049 = vpack.c.b16 %v842, %v833
        %v1050 = vpack.c.b16 %v843, %v834
        %v1051 = vpack.c.b16 %v853, %v844
        %v1052 = vpack.c.b16 %v854, %v845
        %v1053 = vpack.c.b16 %v855, %v846
        %v1054 = vpack.c.b16 %v856, %v847
        %v1055 = vpack.c.b16 %v857, %v848
        %v1056 = vpack.c.b16 %v858, %v849
        %v1057 = vpack.c.b16 %v859, %v850
        %v1058 = vpack.c.b16 %v860, %v851
        %v1059 = vpack.c.b16 %v861, %v852
        %v1060 = vpack.c.b16 %v871, %v862
        %v1061 = vpack.c.b16 %v872, %v863
        %v1062 = vpack.c.b16 %v873, %v864
        %v1063 = vpack.c.b16 %v874, %v865
        %v1064 = vpack.c.b16 %v875, %v866
        %v1065 = vpack.c.b16 %v876, %v867
        %v1066 = vpack.c.b16 %v877, %v868
        %v1067 = vpack.c.b16 %v878, %v869
        %v1068 = vpack.c.b16 %v879, %v870
        %v1069 = vpack.c.b16 %v889, %v880
        %v1070 = vpack.c.b16 %v890, %v881
        %v1071 = vpack.c.b16 %v891, %v882
        %v1072 = vpack.c.b16 %v892, %v883
        %v1073 = vpack.c.b16 %v893, %v884
        %v1074 = vpack.c.b16 %v894, %v885
        %v1075 = vpack.c.b16 %v895, %v886
        %v1076 = vpack.c.b16 %v896, %v887
        %v1077 = vpack.c.b16 %v897, %v888
        %v1078 = vpack.c.b16 %v907, %v898
        %v1079 = vpack.c.b16 %v908, %v899
        %v1080 = vpack.c.b16 %v909, %v900
        %v1081 = vpack.c.b16 %v910, %v901
        %v1082 = vpack.c.b16 %v911, %v902
        %v1083 = vpack.c.b16 %v912, %v903
        %v1084 = vpack.c.b16 %v913, %v904
        %v1085 = vpack.c.b16 %v914, %v905
        %v1086 = vpack.c.b16 %v915, %v906
        %v1087 = vpack.c.b16 %v925, %v916
        %v1088 = vpack.c.b16 %v926, %v917
        %v1089 = vpack.c.b16 %v927, %v918
        %v1090 = vpack.c.b16 %v928, %v919
        %v1091 = vpack.c.b16 %v929, %v920
        %v1092 = vpack.c.b16 %v930, %v921
        %v1093 = vpack.c.b16 %v931, %v922
        %v1094 = vpack.c.b16 %v932, %v923
        %v1095 = vpack.c.b16 %v933, %v924
        %v1096 = vpack.c.b16 %v943, %v934
        %v1097 = vpack.c.b16 %v944, %v935
        %v1098 = vpack.c.b16 %v945, %v936
        %v1099 = vpack.c.b16 %v946, %v937
        %v1100 = vpack.c.b16 %v947, %v938
        %v1101 = vpack.c.b16 %v948, %v939
        %v1102 = vpack.c.b16 %v949, %v940
        %v1103 = vpack.c.b16 %v950, %v941
        %v1104 = vpack.c.b16 %v951, %v942
        %v1105 = vpack.c.b16 %v961, %v952
        %v1106 = vpack.c.b16 %v962, %v953
        %v1107 = vpack.c.b16 %v963, %v954
        %v1108 = vpack.c.b16 %v964, %v955
        %v1109 = vpack.c.b16 %v965, %v956
        %v1110 = vpack.c.b16 %v966, %v957
        %v1111 = vpack.c.b16 %v967, %v958
        %v1112 = vpack.c.b16 %v968, %v959
        %v1113 = vpack.c.b16 %v969, %v960
        %v1402 = vunpack.c.l.b16 %v374
        %v1403 = vunpack.c.l.b16 %v375
        %v1404 = vunpack.c.l.b16 %v376
        %v1405 = vunpack.c.l.b16 %v377
        %v1406 = vunpack.c.l.b16 %v378
        %v1407 = vunpack.c.l.b16 %v379
        %v1408 = vunpack.c.l.b16 %v380
        %v1409 = vunpack.c.l.b16 %v381
        %v1410 = vunpack.c.l.b16 %v382
        %v1411 = vunpack.c.l.b16 %v383
        %v1412 = vunpack.c.l.b16 %v384
        %v1413 = vunpack.c.l.b16 %v385
        %v1414 = vunpack.c.l.b16 %v386
        %v1415 = vunpack.c.l.b16 %v387
        %v1416 = vunpack.c.l.b16 %v388
        %v1417 = vunpack.c.l.b16 %v389
        %v1418 = vunpack.c.l.b16 %v390
        %v1419 = vunpack.c.l.b16 %v391
        %v1420 = vunpack.c.l.b16 %v392
        %v1421 = vunpack.c.l.b16 %v393
        %v1422 = vunpack.c.l.b16 %v394
        %v1423 = vunpack.c.l.b16 %v395
        %v1424 = vunpack.c.l.b16 %v396
        %v1425 = vunpack.c.l.b16 %v397
        %v1426 = vunpack.c.l.b16 %v398
        %v1427 = vunpack.c.l.b16 %v399
        %v1428 = vunpack.c.l.b16 %v400
        %v1429 = vunpack.c.l.b16 %v401
        %v1430 = vunpack.c.l.b16 %v402
        %v1431 = vunpack.c.l.b16 %v403
        %v1432 = vunpack.c.l.b16 %v404
        %v1433 = vunpack.c.l.b16 %v405
        %v1434 = vunpack.c.l.b16 %v406
        %v1435 = vunpack.c.l.b16 %v407
        %v1436 = vunpack.c.l.b16 %v408
        %v1437 = vunpack.c.l.b16 %v409
        %v1438 = vunpack.c.l.b16 %v410
        %v1439 = vunpack.c.l.b16 %v411
        %v1440 = vunpack.c.l.b16 %v412
        %v1441 = vunpack.c.l.b16 %v413
        %v1442 = vunpack.c.l.b16 %v414
        %v1443 = vunpack.c.l.b16 %v415
        %v1444 = vunpack.c.l.b16 %v416
        %v1445 = vunpack.c.l.b16 %v417
        %v1446 = vunpack.c.l.b16 %v418
        %v1447 = vunpack.c.l.b16 %v419
        %v1448 = vunpack.c.l.b16 %v420
        %v1449 = vunpack.c.l.b16 %v421
        %v1450 = vunpack.c.l.b16 %v422
        %v1451 = vunpack.c.l.b16 %v423
        %v1452 = vunpack.c.l.b16 %v424
        %v1453 = vunpack.c.l.b16 %v425
        %v1454 = vunpack.c.l.b16 %v426
        %v1455 = vunpack.c.l.b16 %v427
        %v1456 = vunpack.c.l.b16 %v428
        %v1457 = vunpack.c.l.b16 %v429
        %v1458 = vunpack.c.l.b16 %v430
        %v1459 = vunpack.c.l.b16 %v431
        %v1460 = vunpack.c.l.b16 %v432
        %v1461 = vunpack.c.l.b16 %v433
        %v1462 = vunpack.c.l.b16 %v434
        %v1463 = vunpack.c.l.b16 %v435
        %v1464 = vunpack.c.l.b16 %v436
        %v1465 = vunpack.c.l.b16 %v437
        %v1466 = vunpack.c.l.b16 %v438
        %v1467 = vunpack.c.l.b16 %v439
        %v1468 = vunpack.c.l.b16 %v440
        %v1469 = vunpack.c.l.b16 %v441
        %v1470 = vunpack.c.l.b16 %v442
        %v1471 = vunpack.c.l.b16 %v443
        %v1472 = vunpack.c.l.b16 %v444
        %v1473 = vunpack.c.l.b16 %v445
        %v1474 = vunpack.c.l.b16 %v446
        %v1475 = vunpack.c.l.b16 %v447
        %v1476 = vunpack.c.l.b16 %v448
        %v1477 = vunpack.c.l.b16 %v449
        %v1478 = vunpack.c.l.b16 %v450
        %v1479 = vunpack.c.l.b16 %v451
        %v1480 = vunpack.c.l.b16 %v452
        %v1481 = vunpack.c.l.b16 %v453
        %v1482 = vunpack.c.l.b16 %v454
        %v1483 = vunpack.c.l.b16 %v455
        %v1484 = vunpack.c.l.b16 %v456
        %v1485 = vunpack.c.l.b16 %v457
        %v1486 = vunpack.c.l.b16 %v458
        %v1487 = vunpack.c.l.b16 %v459
        %v1488 = vunpack.c.l.b16 %v460
        %v1489 = vunpack.c.l.b16 %v461
        %v1490 = vunpack.c.l.b16 %v462
        %v1491 = vunpack.c.l.b16 %v463
        %v1492 = vunpack.c.l.b16 %v464
        %v1493 = vunpack.c.l.b16 %v465
        %v1494 = vunpack.c.l.b16 %v466
        %v1495 = vunpack.c.l.b16 %v467
        %v1496 = vunpack.c.l.b16 %v468
        %v1497 = vunpack.c.l.b16 %v469
        %v1498 = vunpack.c.l.b16 %v470
        %v1499 = vunpack.c.l.b16 %v471
        %v1500 = vunpack.c.l.b16 %v472
        %v1501 = vunpack.c.l.b16 %v473
        %v1502 = vunpack.c.l.b16 %v474
        %v1503 = vunpack.c.l.b16 %v475
        %v1504 = vunpack.c.l.b16 %v476
        %v1505 = vunpack.c.l.b16 %v477
        %v1506 = vunpack.c.l.b16 %v478
        %v1507 = vunpack.c.l.b16 %v479
        %v1508 = vunpack.c.l.b16 %v480
        %v1509 = vunpack.c.l.b16 %v481
        %v1510 = vunpack.c.l.b16 %v482
        %v1511 = vunpack.c.l.b16 %v483
        %v1512 = vunpack.c.l.b16 %v484
        %v1513 = vunpack.c.l.b16 %v485
        %v1514 = vunpack.c.l.b16 %v486
        %v1515 = vunpack.c.l.b16 %v487
        %v1516 = vunpack.c.l.b16 %v488
        %v1517 = vunpack.c.l.b16 %v489
        %v1518 = vunpack.c.l.b16 %v490
        %v1519 = vunpack.c.l.b16 %v491
        %v1520 = vunpack.c.l.b16 %v492
        %v1521 = vunpack.c.l.b16 %v493
        %v1522 = vunpack.c.l.b16 %v494
        %v1523 = vunpack.c.l.b16 %v495
        %v1524 = vunpack.c.l.b16 %v496
        %v1525 = vunpack.c.l.b16 %v497
        %v1526 = vunpack.c.l.b16 %v498
        %v1527 = vunpack.c.l.b16 %v499
        %v1528 = vunpack.c.l.b16 %v500
        %v1529 = vunpack.c.l.b16 %v501
        %v1530 = vunpack.c.l.b16 %v502
        %v1531 = vunpack.c.l.b16 %v503
        %v1532 = vunpack.c.l.b16 %v504
        %v1533 = vunpack.c.l.b16 %v505
        %v1534 = vunpack.c.l.b16 %v506
        %v1535 = vunpack.c.l.b16 %v507
        %v1536 = vunpack.c.l.b16 %v508
        %v1537 = vunpack.c.l.b16 %v509
        %v1538 = vunpack.c.l.b16 %v510
        %v1539 = vunpack.c.l.b16 %v511
        %v1540 = vunpack.c.l.b16 %v512
        %v1541 = vunpack.c.l.b16 %v513
        %v1542 = vunpack.c.l.b16 %v514
        %v1543 = vunpack.c.l.b16 %v515
        %v1544 = vunpack.c.l.b16 %v516
        %v1545 = vunpack.c.l.b16 %v517
        %v1546 = vpack.c.b16 %v1403, %v1402
        %v1547 = vpack.c.b16 %v1405, %v1404
        %v1548 = vpack.c.b16 %v1407, %v1406
        %v1549 = vpack.c.b16 %v1409, %v1408
        %v1550 = vpack.c.b16 %v1411, %v1410
        %v1551 = vpack.c.b16 %v1413, %v1412
        %v1552 = vpack.c.b16 %v1415, %v1414
        %v1553 = vpack.c.b16 %v1417, %v1416
        %v1554 = vpack.c.b16 %v1419, %v1418
        %v1555 = vpack.c.b16 %v1421, %v1420
        %v1556 = vpack.c.b16 %v1423, %v1422
        %v1557 = vpack.c.b16 %v1425, %v1424
        %v1558 = vpack.c.b16 %v1427, %v1426
        %v1559 = vpack.c.b16 %v1429, %v1428
        %v1560 = vpack.c.b16 %v1431, %v1430
        %v1561 = vpack.c.b16 %v1433, %v1432
        %v1562 = vpack.c.b16 %v1435, %v1434
        %v1563 = vpack.c.b16 %v1437, %v1436
        %v1564 = vpack.c.b16 %v1439, %v1438
        %v1565 = vpack.c.b16 %v1441, %v1440
        %v1566 = vpack.c.b16 %v1443, %v1442
        %v1567 = vpack.c.b16 %v1445, %v1444
        %v1568 = vpack.c.b16 %v1447, %v1446
        %v1569 = vpack.c.b16 %v1449, %v1448
        %v1570 = vpack.c.b16 %v1451, %v1450
        %v1571 = vpack.c.b16 %v1453, %v1452
        %v1572 = vpack.c.b16 %v1455, %v1454
        %v1573 = vpack.c.b16 %v1457, %v1456
        %v1574 = vpack.c.b16 %v1459, %v1458
        %v1575 = vpack.c.b16 %v1461, %v1460
        %v1576 = vpack.c.b16 %v1463, %v1462
        %v1577 = vpack.c.b16 %v1465, %v1464
        %v1578 = vpack.c.b16 %v1467, %v1466
        %v1579 = vpack.c.b16 %v1469, %v1468
        %v1580 = vpack.c.b16 %v1471, %v1470
        %v1581 = vpack.c.b16 %v1473, %v1472
        %v1582 = vpack.c.b16 %v1475, %v1474
        %v1583 = vpack.c.b16 %v1477, %v1476
        %v1584 = vpack.c.b16 %v1479, %v1478
        %v1585 = vpack.c.b16 %v1481, %v1480
        %v1586 = vpack.c.b16 %v1483, %v1482
        %v1587 = vpack.c.b16 %v1485, %v1484
        %v1588 = vpack.c.b16 %v1487, %v1486
        %v1589 = vpack.c.b16 %v1489, %v1488
        %v1590 = vpack.c.b16 %v1491, %v1490
        %v1591 = vpack.c.b16 %v1493, %v1492
        %v1592 = vpack.c.b16 %v1495, %v1494
        %v1593 = vpack.c.b16 %v1497, %v1496
        %v1594 = vpack.c.b16 %v1499, %v1498
        %v1595 = vpack.c.b16 %v1501, %v1500
        %v1596 = vpack.c.b16 %v1503, %v1502
        %v1597 = vpack.c.b16 %v1505, %v1504
        %v1598 = vpack.c.b16 %v1507, %v1506
        %v1599 = vpack.c.b16 %v1509, %v1508
        %v1600 = vpack.c.b16 %v1511, %v1510
        %v1601 = vpack.c.b16 %v1513, %v1512
        %v1602 = vpack.c.b16 %v1515, %v1514
        %v1603 = vpack.c.b16 %v1517, %v1516
        %v1604 = vpack.c.b16 %v1519, %v1518
        %v1605 = vpack.c.b16 %v1521, %v1520
        %v1606 = vpack.c.b16 %v1523, %v1522
        %v1607 = vpack.c.b16 %v1525, %v1524
        %v1608 = vpack.c.b16 %v1527, %v1526
        %v1609 = vpack.c.b16 %v1529, %v1528
        %v1610 = vpack.c.b16 %v1531, %v1530
        %v1611 = vpack.c.b16 %v1533, %v1532
        %v1612 = vpack.c.b16 %v1535, %v1534
        %v1613 = vpack.c.b16 %v1537, %v1536
        %v1614 = vpack.c.b16 %v1539, %v1538
        %v1615 = vpack.c.b16 %v1541, %v1540
        %v1616 = vpack.c.b16 %v1543, %v1542
        %v1617 = vpack.c.b16 %v1545, %v1544
        %1690 = vmatpush.bf16.msra.mxu0 %v1553
        %1691 = vmatpush.bf16.msra.mxu0 %v1552
        %1692 = vmatpush.bf16.msra.mxu0 %v1551
        %1693 = vmatpush.bf16.msra.mxu0 %v1550
        %1694 = vmatpush.bf16.msra.mxu0 %v1549
        %1695 = vmatpush.bf16.msra.mxu0 %v1548
        %1696 = vmatpush.bf16.msra.mxu0 %v1547
        %1697 = vmatpush.bf16.msra.mxu0 %v1546
        %1698 = vmatmul.bf16.gmra.mxu0 %v970
        %v1699 = vpop.f32.mrf.mxu0
        %v1700 = vadd.f32 %v520, %v1699
        %v1701 = vpop.f32.mrf.mxu0
        %v1702 = vadd.f32 %v520, %v1701
        %1703 = vmatmul.bf16.gmra.mxu0 %v979
        %v1704 = vpop.f32.mrf.mxu0
        %v1705 = vadd.f32 %v520, %v1704
        %v1706 = vpop.f32.mrf.mxu0
        %v1707 = vadd.f32 %v520, %v1706
        %1708 = vmatmul.bf16.gmra.mxu0 %v988
        %v1709 = vpop.f32.mrf.mxu0
        %v1710 = vadd.f32 %v520, %v1709
        %v1711 = vpop.f32.mrf.mxu0
        %v1712 = vadd.f32 %v520, %v1711
        %1713 = vmatmul.bf16.gmra.mxu0 %v997
        %v1714 = vpop.f32.mrf.mxu0
        %v1715 = vadd.f32 %v520, %v1714
        %v1716 = vpop.f32.mrf.mxu0
        %v1717 = vadd.f32 %v520, %v1716
        %1718 = vmatmul.bf16.gmra.mxu0 %v1006
        %v1719 = vpop.f32.mrf.mxu0
        %v1720 = vadd.f32 %v520, %v1719
        %v1721 = vpop.f32.mrf.mxu0
        %v1722 = vadd.f32 %v520, %v1721
        %1723 = vmatmul.bf16.gmra.mxu0 %v1015
        %v1724 = vpop.f32.mrf.mxu0
        %v1725 = vadd.f32 %v520, %v1724
        %v1726 = vpop.f32.mrf.mxu0
        %v1727 = vadd.f32 %v520, %v1726
        %1728 = vmatmul.bf16.gmra.mxu0 %v1024
        %v1729 = vpop.f32.mrf.mxu0
        %v1730 = vadd.f32 %v520, %v1729
        %v1731 = vpop.f32.mrf.mxu0
        %v1732 = vadd.f32 %v520, %v1731
        %1733 = vmatmul.bf16.gmra.mxu0 %v1033
        %v1734 = vpop.f32.mrf.mxu0
        %v1735 = vadd.f32 %v520, %v1734
        %v1736 = vpop.f32.mrf.mxu0
        %v1737 = vadd.f32 %v520, %v1736
        %1738 = vmatmul.bf16.gmra.mxu0 %v1042
        %v1739 = vpop.f32.mrf.mxu0
        %v1740 = vadd.f32 %v520, %v1739
        %v1741 = vpop.f32.mrf.mxu0
        %v1742 = vadd.f32 %v520, %v1741
        %1743 = vmatmul.bf16.gmra.mxu0 %v1051
        %v1744 = vpop.f32.mrf.mxu0
        %v1745 = vadd.f32 %v520, %v1744
        %v1746 = vpop.f32.mrf.mxu0
        %v1747 = vadd.f32 %v520, %v1746
        %1748 = vmatmul.bf16.gmra.mxu0 %v1060
        %v1749 = vpop.f32.mrf.mxu0
        %v1750 = vadd.f32 %v520, %v1749
        %v1751 = vpop.f32.mrf.mxu0
        %v1752 = vadd.f32 %v520, %v1751
        %1753 = vmatmul.bf16.gmra.mxu0 %v1069
        %v1754 = vpop.f32.mrf.mxu0
        %v1755 = vadd.f32 %v520, %v1754
        %v1756 = vpop.f32.mrf.mxu0
        %v1757 = vadd.f32 %v520, %v1756
        %1758 = vmatmul.bf16.gmra.mxu0 %v1078
        %v1759 = vpop.f32.mrf.mxu0
        %v1760 = vadd.f32 %v520, %v1759
        %v1761 = vpop.f32.mrf.mxu0
        %v1762 = vadd.f32 %v520, %v1761
        %1763 = vmatmul.bf16.gmra.mxu0 %v1087
        %v1764 = vpop.f32.mrf.mxu0
        %v1765 = vadd.f32 %v520, %v1764
        %v1766 = vpop.f32.mrf.mxu0
        %v1767 = vadd.f32 %v520, %v1766
        %1768 = vmatmul.bf16.gmra.mxu0 %v1096
        %v1769 = vpop.f32.mrf.mxu0
        %v1770 = vadd.f32 %v520, %v1769
        %v1771 = vpop.f32.mrf.mxu0
        %v1772 = vadd.f32 %v520, %v1771
        %1773 = vmatmul.bf16.gmra.mxu0 %v1105
        %v1774 = vpop.f32.mrf.mxu0
        %v1775 = vadd.f32 %v520, %v1774
        %v1776 = vpop.f32.mrf.mxu0
        %v1777 = vadd.f32 %v520, %v1776
        %1778 = vdwg.mxu0
        %1779 = vmatpush.bf16.msra.mxu0 %v1561
        %1780 = vmatpush.bf16.msra.mxu0 %v1560
        %1781 = vmatpush.bf16.msra.mxu0 %v1559
        %1782 = vmatpush.bf16.msra.mxu0 %v1558
        %1783 = vmatpush.bf16.msra.mxu0 %v1557
        %1784 = vmatpush.bf16.msra.mxu0 %v1556
        %1785 = vmatpush.bf16.msra.mxu0 %v1555
        %1786 = vmatpush.bf16.msra.mxu0 %v1554
        %1787 = vmatmul.bf16.gmra.mxu0 %v971
        %v1788 = vpop.f32.mrf.mxu0
        %v1789 = vadd.f32 %v1700, %v1788
        %v1790 = vpop.f32.mrf.mxu0
        %v1791 = vadd.f32 %v1702, %v1790
        %1792 = vmatmul.bf16.gmra.mxu0 %v980
        %v1793 = vpop.f32.mrf.mxu0
        %v1794 = vadd.f32 %v1705, %v1793
        %v1795 = vpop.f32.mrf.mxu0
        %v1796 = vadd.f32 %v1707, %v1795
        %1797 = vmatmul.bf16.gmra.mxu0 %v989
        %v1798 = vpop.f32.mrf.mxu0
        %v1799 = vadd.f32 %v1710, %v1798
        %v1800 = vpop.f32.mrf.mxu0
        %v1801 = vadd.f32 %v1712, %v1800
        %1802 = vmatmul.bf16.gmra.mxu0 %v998
        %v1803 = vpop.f32.mrf.mxu0
        %v1804 = vadd.f32 %v1715, %v1803
        %v1805 = vpop.f32.mrf.mxu0
        %v1806 = vadd.f32 %v1717, %v1805
        %1807 = vmatmul.bf16.gmra.mxu0 %v1007
        %v1808 = vpop.f32.mrf.mxu0
        %v1809 = vadd.f32 %v1720, %v1808
        %v1810 = vpop.f32.mrf.mxu0
        %v1811 = vadd.f32 %v1722, %v1810
        %1812 = vmatmul.bf16.gmra.mxu0 %v1016
        %v1813 = vpop.f32.mrf.mxu0
        %v1814 = vadd.f32 %v1725, %v1813
        %v1815 = vpop.f32.mrf.mxu0
        %v1816 = vadd.f32 %v1727, %v1815
        %1817 = vmatmul.bf16.gmra.mxu0 %v1025
        %v1818 = vpop.f32.mrf.mxu0
        %v1819 = vadd.f32 %v1730, %v1818
        %v1820 = vpop.f32.mrf.mxu0
        %v1821 = vadd.f32 %v1732, %v1820
        %1822 = vmatmul.bf16.gmra.mxu0 %v1034
        %v1823 = vpop.f32.mrf.mxu0
        %v1824 = vadd.f32 %v1735, %v1823
        %v1825 = vpop.f32.mrf.mxu0
        %v1826 = vadd.f32 %v1737, %v1825
        %1827 = vmatmul.bf16.gmra.mxu0 %v1043
        %v1828 = vpop.f32.mrf.mxu0
        %v1829 = vadd.f32 %v1740, %v1828
        %v1830 = vpop.f32.mrf.mxu0
        %v1831 = vadd.f32 %v1742, %v1830
        %1832 = vmatmul.bf16.gmra.mxu0 %v1052
        %v1833 = vpop.f32.mrf.mxu0
        %v1834 = vadd.f32 %v1745, %v1833
        %v1835 = vpop.f32.mrf.mxu0
        %v1836 = vadd.f32 %v1747, %v1835
        %1837 = vmatmul.bf16.gmra.mxu0 %v1061
        %v1838 = vpop.f32.mrf.mxu0
        %v1839 = vadd.f32 %v1750, %v1838
        %v1840 = vpop.f32.mrf.mxu0
        %v1841 = vadd.f32 %v1752, %v1840
        %1842 = vmatmul.bf16.gmra.mxu0 %v1070
        %v1843 = vpop.f32.mrf.mxu0
        %v1844 = vadd.f32 %v1755, %v1843
        %v1845 = vpop.f32.mrf.mxu0
        %v1846 = vadd.f32 %v1757, %v1845
        %1847 = vmatmul.bf16.gmra.mxu0 %v1079
        %v1848 = vpop.f32.mrf.mxu0
        %v1849 = vadd.f32 %v1760, %v1848
        %v1850 = vpop.f32.mrf.mxu0
        %v1851 = vadd.f32 %v1762, %v1850
        %1852 = vmatmul.bf16.gmra.mxu0 %v1088
        %v1853 = vpop.f32.mrf.mxu0
        %v1854 = vadd.f32 %v1765, %v1853
        %v1855 = vpop.f32.mrf.mxu0
        %v1856 = vadd.f32 %v1767, %v1855
        %1857 = vmatmul.bf16.gmra.mxu0 %v1097
        %v1858 = vpop.f32.mrf.mxu0
        %v1859 = vadd.f32 %v1770, %v1858
        %v1860 = vpop.f32.mrf.mxu0
        %v1861 = vadd.f32 %v1772, %v1860
        %1862 = vmatmul.bf16.gmra.mxu0 %v1106
        %v1863 = vpop.f32.mrf.mxu0
        %v1864 = vadd.f32 %v1775, %v1863
        %v1865 = vpop.f32.mrf.mxu0
        %v1866 = vadd.f32 %v1777, %v1865
        %1867 = vdwg.mxu0
        %1868 = vmatpush.bf16.msra.mxu0 %v1569
        %1869 = vmatpush.bf16.msra.mxu0 %v1568
        %1870 = vmatpush.bf16.msra.mxu0 %v1567
        %1871 = vmatpush.bf16.msra.mxu0 %v1566
        %1872 = vmatpush.bf16.msra.mxu0 %v1565
        %1873 = vmatpush.bf16.msra.mxu0 %v1564
        %1874 = vmatpush.bf16.msra.mxu0 %v1563
        %1875 = vmatpush.bf16.msra.mxu0 %v1562
        %1876 = vmatmul.bf16.gmra.mxu0 %v972
        %v1877 = vpop.f32.mrf.mxu0
        %v1878 = vadd.f32 %v1789, %v1877
        %v1879 = vpop.f32.mrf.mxu0
        %v1880 = vadd.f32 %v1791, %v1879
        %1881 = vmatmul.bf16.gmra.mxu0 %v981
        %v1882 = vpop.f32.mrf.mxu0
        %v1883 = vadd.f32 %v1794, %v1882
        %v1884 = vpop.f32.mrf.mxu0
        %v1885 = vadd.f32 %v1796, %v1884
        %1886 = vmatmul.bf16.gmra.mxu0 %v990
        %v1887 = vpop.f32.mrf.mxu0
        %v1888 = vadd.f32 %v1799, %v1887
        %v1889 = vpop.f32.mrf.mxu0
        %v1890 = vadd.f32 %v1801, %v1889
        %1891 = vmatmul.bf16.gmra.mxu0 %v999
        %v1892 = vpop.f32.mrf.mxu0
        %v1893 = vadd.f32 %v1804, %v1892
        %v1894 = vpop.f32.mrf.mxu0
        %v1895 = vadd.f32 %v1806, %v1894
        %1896 = vmatmul.bf16.gmra.mxu0 %v1008
        %v1897 = vpop.f32.mrf.mxu0
        %v1898 = vadd.f32 %v1809, %v1897
        %v1899 = vpop.f32.mrf.mxu0
        %v1900 = vadd.f32 %v1811, %v1899
        %1901 = vmatmul.bf16.gmra.mxu0 %v1017
        %v1902 = vpop.f32.mrf.mxu0
        %v1903 = vadd.f32 %v1814, %v1902
        %v1904 = vpop.f32.mrf.mxu0
        %v1905 = vadd.f32 %v1816, %v1904
        %1906 = vmatmul.bf16.gmra.mxu0 %v1026
        %v1907 = vpop.f32.mrf.mxu0
        %v1908 = vadd.f32 %v1819, %v1907
        %v1909 = vpop.f32.mrf.mxu0
        %v1910 = vadd.f32 %v1821, %v1909
        %1911 = vmatmul.bf16.gmra.mxu0 %v1035
        %v1912 = vpop.f32.mrf.mxu0
        %v1913 = vadd.f32 %v1824, %v1912
        %v1914 = vpop.f32.mrf.mxu0
        %v1915 = vadd.f32 %v1826, %v1914
        %1916 = vmatmul.bf16.gmra.mxu0 %v1044
        %v1917 = vpop.f32.mrf.mxu0
        %v1918 = vadd.f32 %v1829, %v1917
        %v1919 = vpop.f32.mrf.mxu0
        %v1920 = vadd.f32 %v1831, %v1919
        %1921 = vmatmul.bf16.gmra.mxu0 %v1053
        %v1922 = vpop.f32.mrf.mxu0
        %v1923 = vadd.f32 %v1834, %v1922
        %v1924 = vpop.f32.mrf.mxu0
        %v1925 = vadd.f32 %v1836, %v1924
        %1926 = vmatmul.bf16.gmra.mxu0 %v1062
        %v1927 = vpop.f32.mrf.mxu0
        %v1928 = vadd.f32 %v1839, %v1927
        %v1929 = vpop.f32.mrf.mxu0
        %v1930 = vadd.f32 %v1841, %v1929
        %1931 = vmatmul.bf16.gmra.mxu0 %v1071
        %v1932 = vpop.f32.mrf.mxu0
        %v1933 = vadd.f32 %v1844, %v1932
        %v1934 = vpop.f32.mrf.mxu0
        %v1935 = vadd.f32 %v1846, %v1934
        %1936 = vmatmul.bf16.gmra.mxu0 %v1080
        %v1937 = vpop.f32.mrf.mxu0
        %v1938 = vadd.f32 %v1849, %v1937
        %v1939 = vpop.f32.mrf.mxu0
        %v1940 = vadd.f32 %v1851, %v1939
        %1941 = vmatmul.bf16.gmra.mxu0 %v1089
        %v1942 = vpop.f32.mrf.mxu0
        %v1943 = vadd.f32 %v1854, %v1942
        %v1944 = vpop.f32.mrf.mxu0
        %v1945 = vadd.f32 %v1856, %v1944
        %1946 = vmatmul.bf16.gmra.mxu0 %v1098
        %v1947 = vpop.f32.mrf.mxu0
        %v1948 = vadd.f32 %v1859, %v1947
        %v1949 = vpop.f32.mrf.mxu0
        %v1950 = vadd.f32 %v1861, %v1949
        %1951 = vmatmul.bf16.gmra.mxu0 %v1107
        %v1952 = vpop.f32.mrf.mxu0
        %v1953 = vadd.f32 %v1864, %v1952
        %v1954 = vpop.f32.mrf.mxu0
        %v1955 = vadd.f32 %v1866, %v1954
        %1956 = vdwg.mxu0
        %1957 = vmatpush.bf16.msra.mxu0 %v1577
        %1958 = vmatpush.bf16.msra.mxu0 %v1576
        %1959 = vmatpush.bf16.msra.mxu0 %v1575
        %1960 = vmatpush.bf16.msra.mxu0 %v1574
        %1961 = vmatpush.bf16.msra.mxu0 %v1573
        %1962 = vmatpush.bf16.msra.mxu0 %v1572
        %1963 = vmatpush.bf16.msra.mxu0 %v1571
        %1964 = vmatpush.bf16.msra.mxu0 %v1570
        %1965 = vmatmul.bf16.gmra.mxu0 %v973
        %v1966 = vpop.f32.mrf.mxu0
        %v1967 = vadd.f32 %v1878, %v1966
        %v1968 = vpop.f32.mrf.mxu0
        %v1969 = vadd.f32 %v1880, %v1968
        %1970 = vmatmul.bf16.gmra.mxu0 %v982
        %v1971 = vpop.f32.mrf.mxu0
        %v1972 = vadd.f32 %v1883, %v1971
        %v1973 = vpop.f32.mrf.mxu0
        %v1974 = vadd.f32 %v1885, %v1973
        %1975 = vmatmul.bf16.gmra.mxu0 %v991
        %v1976 = vpop.f32.mrf.mxu0
        %v1977 = vadd.f32 %v1888, %v1976
        %v1978 = vpop.f32.mrf.mxu0
        %v1979 = vadd.f32 %v1890, %v1978
        %1980 = vmatmul.bf16.gmra.mxu0 %v1000
        %v1981 = vpop.f32.mrf.mxu0
        %v1982 = vadd.f32 %v1893, %v1981
        %v1983 = vpop.f32.mrf.mxu0
        %v1984 = vadd.f32 %v1895, %v1983
        %1985 = vmatmul.bf16.gmra.mxu0 %v1009
        %v1986 = vpop.f32.mrf.mxu0
        %v1987 = vadd.f32 %v1898, %v1986
        %v1988 = vpop.f32.mrf.mxu0
        %v1989 = vadd.f32 %v1900, %v1988
        %1990 = vmatmul.bf16.gmra.mxu0 %v1018
        %v1991 = vpop.f32.mrf.mxu0
        %v1992 = vadd.f32 %v1903, %v1991
        %v1993 = vpop.f32.mrf.mxu0
        %v1994 = vadd.f32 %v1905, %v1993
        %1995 = vmatmul.bf16.gmra.mxu0 %v1027
        %v1996 = vpop.f32.mrf.mxu0
        %v1997 = vadd.f32 %v1908, %v1996
        %v1998 = vpop.f32.mrf.mxu0
        %v1999 = vadd.f32 %v1910, %v1998
        %2000 = vmatmul.bf16.gmra.mxu0 %v1036
        %v2001 = vpop.f32.mrf.mxu0
        %v2002 = vadd.f32 %v1913, %v2001
        %v2003 = vpop.f32.mrf.mxu0
        %v2004 = vadd.f32 %v1915, %v2003
        %2005 = vmatmul.bf16.gmra.mxu0 %v1045
        %v2006 = vpop.f32.mrf.mxu0
        %v2007 = vadd.f32 %v1918, %v2006
        %v2008 = vpop.f32.mrf.mxu0
        %v2009 = vadd.f32 %v1920, %v2008
        %2010 = vmatmul.bf16.gmra.mxu0 %v1054
        %v2011 = vpop.f32.mrf.mxu0
        %v2012 = vadd.f32 %v1923, %v2011
        %v2013 = vpop.f32.mrf.mxu0
        %v2014 = vadd.f32 %v1925, %v2013
        %2015 = vmatmul.bf16.gmra.mxu0 %v1063
        %v2016 = vpop.f32.mrf.mxu0
        %v2017 = vadd.f32 %v1928, %v2016
        %v2018 = vpop.f32.mrf.mxu0
        %v2019 = vadd.f32 %v1930, %v2018
        %2020 = vmatmul.bf16.gmra.mxu0 %v1072
        %v2021 = vpop.f32.mrf.mxu0
        %v2022 = vadd.f32 %v1933, %v2021
        %v2023 = vpop.f32.mrf.mxu0
        %v2024 = vadd.f32 %v1935, %v2023
        %2025 = vmatmul.bf16.gmra.mxu0 %v1081
        %v2026 = vpop.f32.mrf.mxu0
        %v2027 = vadd.f32 %v1938, %v2026
        %v2028 = vpop.f32.mrf.mxu0
        %v2029 = vadd.f32 %v1940, %v2028
        %2030 = vmatmul.bf16.gmra.mxu0 %v1090
        %v2031 = vpop.f32.mrf.mxu0
        %v2032 = vadd.f32 %v1943, %v2031
        %v2033 = vpop.f32.mrf.mxu0
        %v2034 = vadd.f32 %v1945, %v2033
        %2035 = vmatmul.bf16.gmra.mxu0 %v1099
        %v2036 = vpop.f32.mrf.mxu0
        %v2037 = vadd.f32 %v1948, %v2036
        %v2038 = vpop.f32.mrf.mxu0
        %v2039 = vadd.f32 %v1950, %v2038
        %2040 = vmatmul.bf16.gmra.mxu0 %v1108
        %v2041 = vpop.f32.mrf.mxu0
        %v2042 = vadd.f32 %v1953, %v2041
        %v2043 = vpop.f32.mrf.mxu0
        %v2044 = vadd.f32 %v1955, %v2043
        %2045 = vdwg.mxu0
        %2046 = vmatpush.bf16.msra.mxu0 %v1585
        %2047 = vmatpush.bf16.msra.mxu0 %v1584
        %2048 = vmatpush.bf16.msra.mxu0 %v1583
        %2049 = vmatpush.bf16.msra.mxu0 %v1582
        %2050 = vmatpush.bf16.msra.mxu0 %v1581
        %2051 = vmatpush.bf16.msra.mxu0 %v1580
        %2052 = vmatpush.bf16.msra.mxu0 %v1579
        %2053 = vmatpush.bf16.msra.mxu0 %v1578
        %2054 = vmatmul.bf16.gmra.mxu0 %v974
        %v2055 = vpop.f32.mrf.mxu0
        %v2056 = vadd.f32 %v1967, %v2055
        %v2057 = vpop.f32.mrf.mxu0
        %v2058 = vadd.f32 %v1969, %v2057
        %2059 = vmatmul.bf16.gmra.mxu0 %v983
        %v2060 = vpop.f32.mrf.mxu0
        %v2061 = vadd.f32 %v1972, %v2060
        %v2062 = vpop.f32.mrf.mxu0
        %v2063 = vadd.f32 %v1974, %v2062
        %2064 = vmatmul.bf16.gmra.mxu0 %v992
        %v2065 = vpop.f32.mrf.mxu0
        %v2066 = vadd.f32 %v1977, %v2065
        %v2067 = vpop.f32.mrf.mxu0
        %v2068 = vadd.f32 %v1979, %v2067
        %2069 = vmatmul.bf16.gmra.mxu0 %v1001
        %v2070 = vpop.f32.mrf.mxu0
        %v2071 = vadd.f32 %v1982, %v2070
        %v2072 = vpop.f32.mrf.mxu0
        %v2073 = vadd.f32 %v1984, %v2072
        %2074 = vmatmul.bf16.gmra.mxu0 %v1010
        %v2075 = vpop.f32.mrf.mxu0
        %v2076 = vadd.f32 %v1987, %v2075
        %v2077 = vpop.f32.mrf.mxu0
        %v2078 = vadd.f32 %v1989, %v2077
        %2079 = vmatmul.bf16.gmra.mxu0 %v1019
        %v2080 = vpop.f32.mrf.mxu0
        %v2081 = vadd.f32 %v1992, %v2080
        %v2082 = vpop.f32.mrf.mxu0
        %v2083 = vadd.f32 %v1994, %v2082
        %2084 = vmatmul.bf16.gmra.mxu0 %v1028
        %v2085 = vpop.f32.mrf.mxu0
        %v2086 = vadd.f32 %v1997, %v2085
        %v2087 = vpop.f32.mrf.mxu0
        %v2088 = vadd.f32 %v1999, %v2087
        %2089 = vmatmul.bf16.gmra.mxu0 %v1037
        %v2090 = vpop.f32.mrf.mxu0
        %v2091 = vadd.f32 %v2002, %v2090
        %v2092 = vpop.f32.mrf.mxu0
        %v2093 = vadd.f32 %v2004, %v2092
        %2094 = vmatmul.bf16.gmra.mxu0 %v1046
        %v2095 = vpop.f32.mrf.mxu0
        %v2096 = vadd.f32 %v2007, %v2095
        %v2097 = vpop.f32.mrf.mxu0
        %v2098 = vadd.f32 %v2009, %v2097
        %2099 = vmatmul.bf16.gmra.mxu0 %v1055
        %v2100 = vpop.f32.mrf.mxu0
        %v2101 = vadd.f32 %v2012, %v2100
        %v2102 = vpop.f32.mrf.mxu0
        %v2103 = vadd.f32 %v2014, %v2102
        %2104 = vmatmul.bf16.gmra.mxu0 %v1064
        %v2105 = vpop.f32.mrf.mxu0
        %v2106 = vadd.f32 %v2017, %v2105
        %v2107 = vpop.f32.mrf.mxu0
        %v2108 = vadd.f32 %v2019, %v2107
        %2109 = vmatmul.bf16.gmra.mxu0 %v1073
        %v2110 = vpop.f32.mrf.mxu0
        %v2111 = vadd.f32 %v2022, %v2110
        %v2112 = vpop.f32.mrf.mxu0
        %v2113 = vadd.f32 %v2024, %v2112
        %2114 = vmatmul.bf16.gmra.mxu0 %v1082
        %v2115 = vpop.f32.mrf.mxu0
        %v2116 = vadd.f32 %v2027, %v2115
        %v2117 = vpop.f32.mrf.mxu0
        %v2118 = vadd.f32 %v2029, %v2117
        %2119 = vmatmul.bf16.gmra.mxu0 %v1091
        %v2120 = vpop.f32.mrf.mxu0
        %v2121 = vadd.f32 %v2032, %v2120
        %v2122 = vpop.f32.mrf.mxu0
        %v2123 = vadd.f32 %v2034, %v2122
        %2124 = vmatmul.bf16.gmra.mxu0 %v1100
        %v2125 = vpop.f32.mrf.mxu0
        %v2126 = vadd.f32 %v2037, %v2125
        %v2127 = vpop.f32.mrf.mxu0
        %v2128 = vadd.f32 %v2039, %v2127
        %2129 = vmatmul.bf16.gmra.mxu0 %v1109
        %v2130 = vpop.f32.mrf.mxu0
        %v2131 = vadd.f32 %v2042, %v2130
        %v2132 = vpop.f32.mrf.mxu0
        %v2133 = vadd.f32 %v2044, %v2132
        %2134 = vdwg.mxu0
        %2135 = vmatpush.bf16.msra.mxu0 %v1593
        %2136 = vmatpush.bf16.msra.mxu0 %v1592
        %2137 = vmatpush.bf16.msra.mxu0 %v1591
        %2138 = vmatpush.bf16.msra.mxu0 %v1590
        %2139 = vmatpush.bf16.msra.mxu0 %v1589
        %2140 = vmatpush.bf16.msra.mxu0 %v1588
        %2141 = vmatpush.bf16.msra.mxu0 %v1587
        %2142 = vmatpush.bf16.msra.mxu0 %v1586
        %2143 = vmatmul.bf16.gmra.mxu0 %v975
        %v2144 = vpop.f32.mrf.mxu0
        %v2145 = vadd.f32 %v2056, %v2144
        %v2146 = vpop.f32.mrf.mxu0
        %v2147 = vadd.f32 %v2058, %v2146
        %2148 = vmatmul.bf16.gmra.mxu0 %v984
        %v2149 = vpop.f32.mrf.mxu0
        %v2150 = vadd.f32 %v2061, %v2149
        %v2151 = vpop.f32.mrf.mxu0
        %v2152 = vadd.f32 %v2063, %v2151
        %2153 = vmatmul.bf16.gmra.mxu0 %v993
        %v2154 = vpop.f32.mrf.mxu0
        %v2155 = vadd.f32 %v2066, %v2154
        %v2156 = vpop.f32.mrf.mxu0
        %v2157 = vadd.f32 %v2068, %v2156
        %2158 = vmatmul.bf16.gmra.mxu0 %v1002
        %v2159 = vpop.f32.mrf.mxu0
        %v2160 = vadd.f32 %v2071, %v2159
        %v2161 = vpop.f32.mrf.mxu0
        %v2162 = vadd.f32 %v2073, %v2161
        %2163 = vmatmul.bf16.gmra.mxu0 %v1011
        %v2164 = vpop.f32.mrf.mxu0
        %v2165 = vadd.f32 %v2076, %v2164
        %v2166 = vpop.f32.mrf.mxu0
        %v2167 = vadd.f32 %v2078, %v2166
        %2168 = vmatmul.bf16.gmra.mxu0 %v1020
        %v2169 = vpop.f32.mrf.mxu0
        %v2170 = vadd.f32 %v2081, %v2169
        %v2171 = vpop.f32.mrf.mxu0
        %v2172 = vadd.f32 %v2083, %v2171
        %2173 = vmatmul.bf16.gmra.mxu0 %v1029
        %v2174 = vpop.f32.mrf.mxu0
        %v2175 = vadd.f32 %v2086, %v2174
        %v2176 = vpop.f32.mrf.mxu0
        %v2177 = vadd.f32 %v2088, %v2176
        %2178 = vmatmul.bf16.gmra.mxu0 %v1038
        %v2179 = vpop.f32.mrf.mxu0
        %v2180 = vadd.f32 %v2091, %v2179
        %v2181 = vpop.f32.mrf.mxu0
        %v2182 = vadd.f32 %v2093, %v2181
        %2183 = vmatmul.bf16.gmra.mxu0 %v1047
        %v2184 = vpop.f32.mrf.mxu0
        %v2185 = vadd.f32 %v2096, %v2184
        %v2186 = vpop.f32.mrf.mxu0
        %v2187 = vadd.f32 %v2098, %v2186
        %2188 = vmatmul.bf16.gmra.mxu0 %v1056
        %v2189 = vpop.f32.mrf.mxu0
        %v2190 = vadd.f32 %v2101, %v2189
        %v2191 = vpop.f32.mrf.mxu0
        %v2192 = vadd.f32 %v2103, %v2191
        %2193 = vmatmul.bf16.gmra.mxu0 %v1065
        %v2194 = vpop.f32.mrf.mxu0
        %v2195 = vadd.f32 %v2106, %v2194
        %v2196 = vpop.f32.mrf.mxu0
        %v2197 = vadd.f32 %v2108, %v2196
        %2198 = vmatmul.bf16.gmra.mxu0 %v1074
        %v2199 = vpop.f32.mrf.mxu0
        %v2200 = vadd.f32 %v2111, %v2199
        %v2201 = vpop.f32.mrf.mxu0
        %v2202 = vadd.f32 %v2113, %v2201
        %2203 = vmatmul.bf16.gmra.mxu0 %v1083
        %v2204 = vpop.f32.mrf.mxu0
        %v2205 = vadd.f32 %v2116, %v2204
        %v2206 = vpop.f32.mrf.mxu0
        %v2207 = vadd.f32 %v2118, %v2206
        %2208 = vmatmul.bf16.gmra.mxu0 %v1092
        %v2209 = vpop.f32.mrf.mxu0
        %v2210 = vadd.f32 %v2121, %v2209
        %v2211 = vpop.f32.mrf.mxu0
        %v2212 = vadd.f32 %v2123, %v2211
        %2213 = vmatmul.bf16.gmra.mxu0 %v1101
        %v2214 = vpop.f32.mrf.mxu0
        %v2215 = vadd.f32 %v2126, %v2214
        %v2216 = vpop.f32.mrf.mxu0
        %v2217 = vadd.f32 %v2128, %v2216
        %2218 = vmatmul.bf16.gmra.mxu0 %v1110
        %v2219 = vpop.f32.mrf.mxu0
        %v2220 = vadd.f32 %v2131, %v2219
        %v2221 = vpop.f32.mrf.mxu0
        %v2222 = vadd.f32 %v2133, %v2221
        %2223 = vdwg.mxu0
        %2224 = vmatpush.bf16.msra.mxu0 %v1601
        %2225 = vmatpush.bf16.msra.mxu0 %v1600
        %2226 = vmatpush.bf16.msra.mxu0 %v1599
        %2227 = vmatpush.bf16.msra.mxu0 %v1598
        %2228 = vmatpush.bf16.msra.mxu0 %v1597
        %2229 = vmatpush.bf16.msra.mxu0 %v1596
        %2230 = vmatpush.bf16.msra.mxu0 %v1595
        %2231 = vmatpush.bf16.msra.mxu0 %v1594
        %2232 = vmatmul.bf16.gmra.mxu0 %v976
        %v2233 = vpop.f32.mrf.mxu0
        %v2234 = vadd.f32 %v2145, %v2233
        %v2235 = vpop.f32.mrf.mxu0
        %v2236 = vadd.f32 %v2147, %v2235
        %2237 = vmatmul.bf16.gmra.mxu0 %v985
        %v2238 = vpop.f32.mrf.mxu0
        %v2239 = vadd.f32 %v2150, %v2238
        %v2240 = vpop.f32.mrf.mxu0
        %v2241 = vadd.f32 %v2152, %v2240
        %2242 = vmatmul.bf16.gmra.mxu0 %v994
        %v2243 = vpop.f32.mrf.mxu0
        %v2244 = vadd.f32 %v2155, %v2243
        %v2245 = vpop.f32.mrf.mxu0
        %v2246 = vadd.f32 %v2157, %v2245
        %2247 = vmatmul.bf16.gmra.mxu0 %v1003
        %v2248 = vpop.f32.mrf.mxu0
        %v2249 = vadd.f32 %v2160, %v2248
        %v2250 = vpop.f32.mrf.mxu0
        %v2251 = vadd.f32 %v2162, %v2250
        %2252 = vmatmul.bf16.gmra.mxu0 %v1012
        %v2253 = vpop.f32.mrf.mxu0
        %v2254 = vadd.f32 %v2165, %v2253
        %v2255 = vpop.f32.mrf.mxu0
        %v2256 = vadd.f32 %v2167, %v2255
        %2257 = vmatmul.bf16.gmra.mxu0 %v1021
        %v2258 = vpop.f32.mrf.mxu0
        %v2259 = vadd.f32 %v2170, %v2258
        %v2260 = vpop.f32.mrf.mxu0
        %v2261 = vadd.f32 %v2172, %v2260
        %2262 = vmatmul.bf16.gmra.mxu0 %v1030
        %v2263 = vpop.f32.mrf.mxu0
        %v2264 = vadd.f32 %v2175, %v2263
        %v2265 = vpop.f32.mrf.mxu0
        %v2266 = vadd.f32 %v2177, %v2265
        %2267 = vmatmul.bf16.gmra.mxu0 %v1039
        %v2268 = vpop.f32.mrf.mxu0
        %v2269 = vadd.f32 %v2180, %v2268
        %v2270 = vpop.f32.mrf.mxu0
        %v2271 = vadd.f32 %v2182, %v2270
        %2272 = vmatmul.bf16.gmra.mxu0 %v1048
        %v2273 = vpop.f32.mrf.mxu0
        %v2274 = vadd.f32 %v2185, %v2273
        %v2275 = vpop.f32.mrf.mxu0
        %v2276 = vadd.f32 %v2187, %v2275
        %2277 = vmatmul.bf16.gmra.mxu0 %v1057
        %v2278 = vpop.f32.mrf.mxu0
        %v2279 = vadd.f32 %v2190, %v2278
        %v2280 = vpop.f32.mrf.mxu0
        %v2281 = vadd.f32 %v2192, %v2280
        %2282 = vmatmul.bf16.gmra.mxu0 %v1066
        %v2283 = vpop.f32.mrf.mxu0
        %v2284 = vadd.f32 %v2195, %v2283
        %v2285 = vpop.f32.mrf.mxu0
        %v2286 = vadd.f32 %v2197, %v2285
        %2287 = vmatmul.bf16.gmra.mxu0 %v1075
        %v2288 = vpop.f32.mrf.mxu0
        %v2289 = vadd.f32 %v2200, %v2288
        %v2290 = vpop.f32.mrf.mxu0
        %v2291 = vadd.f32 %v2202, %v2290
        %2292 = vmatmul.bf16.gmra.mxu0 %v1084
        %v2293 = vpop.f32.mrf.mxu0
        %v2294 = vadd.f32 %v2205, %v2293
        %v2295 = vpop.f32.mrf.mxu0
        %v2296 = vadd.f32 %v2207, %v2295
        %2297 = vmatmul.bf16.gmra.mxu0 %v1093
        %v2298 = vpop.f32.mrf.mxu0
        %v2299 = vadd.f32 %v2210, %v2298
        %v2300 = vpop.f32.mrf.mxu0
        %v2301 = vadd.f32 %v2212, %v2300
        %2302 = vmatmul.bf16.gmra.mxu0 %v1102
        %v2303 = vpop.f32.mrf.mxu0
        %v2304 = vadd.f32 %v2215, %v2303
        %v2305 = vpop.f32.mrf.mxu0
        %v2306 = vadd.f32 %v2217, %v2305
        %2307 = vmatmul.bf16.gmra.mxu0 %v1111
        %v2308 = vpop.f32.mrf.mxu0
        %v2309 = vadd.f32 %v2220, %v2308
        %v2310 = vpop.f32.mrf.mxu0
        %v2311 = vadd.f32 %v2222, %v2310
        %2312 = vdwg.mxu0
        %2313 = vmatpush.bf16.msra.mxu0 %v1609
        %2314 = vmatpush.bf16.msra.mxu0 %v1608
        %2315 = vmatpush.bf16.msra.mxu0 %v1607
        %2316 = vmatpush.bf16.msra.mxu0 %v1606
        %2317 = vmatpush.bf16.msra.mxu0 %v1605
        %2318 = vmatpush.bf16.msra.mxu0 %v1604
        %2319 = vmatpush.bf16.msra.mxu0 %v1603
        %2320 = vmatpush.bf16.msra.mxu0 %v1602
        %2321 = vmatmul.bf16.gmra.mxu0 %v977
        %v2322 = vpop.f32.mrf.mxu0
        %v2323 = vadd.f32 %v2234, %v2322
        %v2324 = vpop.f32.mrf.mxu0
        %v2325 = vadd.f32 %v2236, %v2324
        %2326 = vmatmul.bf16.gmra.mxu0 %v986
        %v2327 = vpop.f32.mrf.mxu0
        %v2328 = vadd.f32 %v2239, %v2327
        %v2329 = vpop.f32.mrf.mxu0
        %v2330 = vadd.f32 %v2241, %v2329
        %2331 = vmatmul.bf16.gmra.mxu0 %v995
        %v2332 = vpop.f32.mrf.mxu0
        %v2333 = vadd.f32 %v2244, %v2332
        %v2334 = vpop.f32.mrf.mxu0
        %v2335 = vadd.f32 %v2246, %v2334
        %2336 = vmatmul.bf16.gmra.mxu0 %v1004
        %v2337 = vpop.f32.mrf.mxu0
        %v2338 = vadd.f32 %v2249, %v2337
        %v2339 = vpop.f32.mrf.mxu0
        %v2340 = vadd.f32 %v2251, %v2339
        %2341 = vmatmul.bf16.gmra.mxu0 %v1013
        %v2342 = vpop.f32.mrf.mxu0
        %v2343 = vadd.f32 %v2254, %v2342
        %v2344 = vpop.f32.mrf.mxu0
        %v2345 = vadd.f32 %v2256, %v2344
        %2346 = vmatmul.bf16.gmra.mxu0 %v1022
        %v2347 = vpop.f32.mrf.mxu0
        %v2348 = vadd.f32 %v2259, %v2347
        %v2349 = vpop.f32.mrf.mxu0
        %v2350 = vadd.f32 %v2261, %v2349
        %2351 = vmatmul.bf16.gmra.mxu0 %v1031
        %v2352 = vpop.f32.mrf.mxu0
        %v2353 = vadd.f32 %v2264, %v2352
        %v2354 = vpop.f32.mrf.mxu0
        %v2355 = vadd.f32 %v2266, %v2354
        %2356 = vmatmul.bf16.gmra.mxu0 %v1040
        %v2357 = vpop.f32.mrf.mxu0
        %v2358 = vadd.f32 %v2269, %v2357
        %v2359 = vpop.f32.mrf.mxu0
        %v2360 = vadd.f32 %v2271, %v2359
        %2361 = vmatmul.bf16.gmra.mxu0 %v1049
        %v2362 = vpop.f32.mrf.mxu0
        %v2363 = vadd.f32 %v2274, %v2362
        %v2364 = vpop.f32.mrf.mxu0
        %v2365 = vadd.f32 %v2276, %v2364
        %2366 = vmatmul.bf16.gmra.mxu0 %v1058
        %v2367 = vpop.f32.mrf.mxu0
        %v2368 = vadd.f32 %v2279, %v2367
        %v2369 = vpop.f32.mrf.mxu0
        %v2370 = vadd.f32 %v2281, %v2369
        %2371 = vmatmul.bf16.gmra.mxu0 %v1067
        %v2372 = vpop.f32.mrf.mxu0
        %v2373 = vadd.f32 %v2284, %v2372
        %v2374 = vpop.f32.mrf.mxu0
        %v2375 = vadd.f32 %v2286, %v2374
        %2376 = vmatmul.bf16.gmra.mxu0 %v1076
        %v2377 = vpop.f32.mrf.mxu0
        %v2378 = vadd.f32 %v2289, %v2377
        %v2379 = vpop.f32.mrf.mxu0
        %v2380 = vadd.f32 %v2291, %v2379
        %2381 = vmatmul.bf16.gmra.mxu0 %v1085
        %v2382 = vpop.f32.mrf.mxu0
        %v2383 = vadd.f32 %v2294, %v2382
        %v2384 = vpop.f32.mrf.mxu0
        %v2385 = vadd.f32 %v2296, %v2384
        %2386 = vmatmul.bf16.gmra.mxu0 %v1094
        %v2387 = vpop.f32.mrf.mxu0
        %v2388 = vadd.f32 %v2299, %v2387
        %v2389 = vpop.f32.mrf.mxu0
        %v2390 = vadd.f32 %v2301, %v2389
        %2391 = vmatmul.bf16.gmra.mxu0 %v1103
        %v2392 = vpop.f32.mrf.mxu0
        %v2393 = vadd.f32 %v2304, %v2392
        %v2394 = vpop.f32.mrf.mxu0
        %v2395 = vadd.f32 %v2306, %v2394
        %2396 = vmatmul.bf16.gmra.mxu0 %v1112
        %v2397 = vpop.f32.mrf.mxu0
        %v2398 = vadd.f32 %v2309, %v2397
        %v2399 = vpop.f32.mrf.mxu0
        %v2400 = vadd.f32 %v2311, %v2399
        %2401 = vdwg.mxu0
        %2402 = vmatpush.bf16.msra.mxu0 %v1617
        %2403 = vmatpush.bf16.msra.mxu0 %v1616
        %2404 = vmatpush.bf16.msra.mxu0 %v1615
        %2405 = vmatpush.bf16.msra.mxu0 %v1614
        %2406 = vmatpush.bf16.msra.mxu0 %v1613
        %2407 = vmatpush.bf16.msra.mxu0 %v1612
        %2408 = vmatpush.bf16.msra.mxu0 %v1611
        %2409 = vmatpush.bf16.msra.mxu0 %v1610
        %2410 = vmatmul.bf16.gmra.mxu0 %v978
        %v2411 = vpop.f32.mrf.mxu0
        %v2412 = vadd.f32 %v2323, %v2411
        %v2413 = vpop.f32.mrf.mxu0
        %v2414 = vadd.f32 %v2325, %v2413
        %2415 = vmatmul.bf16.gmra.mxu0 %v987
        %v2416 = vpop.f32.mrf.mxu0
        %v2417 = vadd.f32 %v2328, %v2416
        %v2418 = vpop.f32.mrf.mxu0
        %v2419 = vadd.f32 %v2330, %v2418
        %2420 = vmatmul.bf16.gmra.mxu0 %v996
        %v2421 = vpop.f32.mrf.mxu0
        %v2422 = vadd.f32 %v2333, %v2421
        %v2423 = vpop.f32.mrf.mxu0
        %v2424 = vadd.f32 %v2335, %v2423
        %2425 = vmatmul.bf16.gmra.mxu0 %v1005
        %v2426 = vpop.f32.mrf.mxu0
        %v2427 = vadd.f32 %v2338, %v2426
        %v2428 = vpop.f32.mrf.mxu0
        %v2429 = vadd.f32 %v2340, %v2428
        %2430 = vmatmul.bf16.gmra.mxu0 %v1014
        %v2431 = vpop.f32.mrf.mxu0
        %v2432 = vadd.f32 %v2343, %v2431
        %v2433 = vpop.f32.mrf.mxu0
        %v2434 = vadd.f32 %v2345, %v2433
        %2435 = vmatmul.bf16.gmra.mxu0 %v1023
        %v2436 = vpop.f32.mrf.mxu0
        %v2437 = vadd.f32 %v2348, %v2436
        %v2438 = vpop.f32.mrf.mxu0
        %v2439 = vadd.f32 %v2350, %v2438
        %2440 = vmatmul.bf16.gmra.mxu0 %v1032
        %v2441 = vpop.f32.mrf.mxu0
        %v2442 = vadd.f32 %v2353, %v2441
        %v2443 = vpop.f32.mrf.mxu0
        %v2444 = vadd.f32 %v2355, %v2443
        %2445 = vmatmul.bf16.gmra.mxu0 %v1041
        %v2446 = vpop.f32.mrf.mxu0
        %v2447 = vadd.f32 %v2358, %v2446
        %v2448 = vpop.f32.mrf.mxu0
        %v2449 = vadd.f32 %v2360, %v2448
        %2450 = vmatmul.bf16.gmra.mxu0 %v1050
        %v2451 = vpop.f32.mrf.mxu0
        %v2452 = vadd.f32 %v2363, %v2451
        %v2453 = vpop.f32.mrf.mxu0
        %v2454 = vadd.f32 %v2365, %v2453
        %2455 = vmatmul.bf16.gmra.mxu0 %v1059
        %v2456 = vpop.f32.mrf.mxu0
        %v2457 = vadd.f32 %v2368, %v2456
        %v2458 = vpop.f32.mrf.mxu0
        %v2459 = vadd.f32 %v2370, %v2458
        %2460 = vmatmul.bf16.gmra.mxu0 %v1068
        %v2461 = vpop.f32.mrf.mxu0
        %v2462 = vadd.f32 %v2373, %v2461
        %v2463 = vpop.f32.mrf.mxu0
        %v2464 = vadd.f32 %v2375, %v2463
        %2465 = vmatmul.bf16.gmra.mxu0 %v1077
        %v2466 = vpop.f32.mrf.mxu0
        %v2467 = vadd.f32 %v2378, %v2466
        %v2468 = vpop.f32.mrf.mxu0
        %v2469 = vadd.f32 %v2380, %v2468
        %2470 = vmatmul.bf16.gmra.mxu0 %v1086
        %v2471 = vpop.f32.mrf.mxu0
        %v2472 = vadd.f32 %v2383, %v2471
        %v2473 = vpop.f32.mrf.mxu0
        %v2474 = vadd.f32 %v2385, %v2473
        %2475 = vmatmul.bf16.gmra.mxu0 %v1095
        %v2476 = vpop.f32.mrf.mxu0
        %v2477 = vadd.f32 %v2388, %v2476
        %v2478 = vpop.f32.mrf.mxu0
        %v2479 = vadd.f32 %v2390, %v2478
        %2480 = vmatmul.bf16.gmra.mxu0 %v1104
        %v2481 = vpop.f32.mrf.mxu0
        %v2482 = vadd.f32 %v2393, %v2481
        %v2483 = vpop.f32.mrf.mxu0
        %v2484 = vadd.f32 %v2395, %v2483
        %2485 = vmatmul.bf16.gmra.mxu0 %v1113
        %v2486 = vpop.f32.mrf.mxu0
        %v2487 = vadd.f32 %v2398, %v2486
        %v2488 = vpop.f32.mrf.mxu0
        %v2489 = vadd.f32 %v2400, %v2488
        %2490 = vdwg.mxu0
        %v2491 = vmax.f32 %v2412, 0.0
        %v2492 = vmax.f32 %v2414, 0.0
        %v2493 = vmax.f32 %v2417, 0.0
        %v2494 = vmax.f32 %v2419, 0.0
        %v2495 = vmax.f32 %v2422, 0.0
        %v2496 = vmax.f32 %v2424, 0.0
        %v2497 = vmax.f32 %v2427, 0.0
        %v2498 = vmax.f32 %v2429, 0.0
        %v2499 = vmax.f32 %v2432, 0.0
        %v2500 = vmax.f32 %v2434, 0.0
        %v2501 = vmax.f32 %v2437, 0.0
        %v2502 = vmax.f32 %v2439, 0.0
        %v2503 = vmax.f32 %v2442, 0.0
        %v2504 = vmax.f32 %v2444, 0.0
        %v2505 = vmax.f32 %v2447, 0.0
        %v2506 = vmax.f32 %v2449, 0.0
        %v2507 = vmax.f32 %v2452, 0.0
        %v2508 = vmax.f32 %v2454, 0.0
        %v2509 = vmax.f32 %v2457, 0.0
        %v2510 = vmax.f32 %v2459, 0.0
        %v2511 = vmax.f32 %v2462, 0.0
        %v2512 = vmax.f32 %v2464, 0.0
        %v2513 = vmax.f32 %v2467, 0.0
        %v2514 = vmax.f32 %v2469, 0.0
        %v2515 = vmax.f32 %v2472, 0.0
        %v2516 = vmax.f32 %v2474, 0.0
        %v2517 = vmax.f32 %v2477, 0.0
        %v2518 = vmax.f32 %v2479, 0.0
        %v2519 = vmax.f32 %v2482, 0.0
        %v2520 = vmax.f32 %v2484, 0.0
        %v2521 = vmax.f32 %v2487, 0.0
        %v2522 = vmax.f32 %v2489, 0.0
        %2523 = vst [vmem:[%s197] sm:$0xff] %v2491
        %2524 = vst [vmem:[%s197 + $0x8] sm:$0xff] %v2492
        %2525 = vst [vmem:[%s197 + $0x10] sm:$0xff] %v2493
        %2526 = vst [vmem:[%s197 + $0x18] sm:$0xff] %v2494
        %2527 = vst [vmem:[%s197 + $0x20] sm:$0xff] %v2495
        %2528 = vst [vmem:[%s197 + $0x28] sm:$0xff] %v2496
        %2529 = vst [vmem:[%s197 + $0x30] sm:$0xff] %v2497
        %2530 = vst [vmem:[%s197 + $0x38] sm:$0xff] %v2498
        %2531 = vst [vmem:[%s197 + $0x40] sm:$0xff] %v2499
        %2532 = vst [vmem:[%s197 + $0x48] sm:$0xff] %v2500
        %2533 = vst [vmem:[%s197 + $0x50] sm:$0xff] %v2501
        %2534 = vst [vmem:[%s197 + $0x58] sm:$0xff] %v2502
        %2535 = vst [vmem:[%s197 + $0x60] sm:$0xff] %v2503
        %2536 = vst [vmem:[%s197 + $0x68] sm:$0xff] %v2504
        %2537 = vst [vmem:[%s197 + $0x70] sm:$0xff] %v2505
        %2538 = vst [vmem:[%s197 + $0x78] sm:$0xff] %v2506
        %2539 = vst [vmem:[%s197 + $0x80] sm:$0xff] %v2507
        %2540 = vst [vmem:[%s197 + $0x88] sm:$0xff] %v2508
        %2541 = vst [vmem:[%s197 + $0x90] sm:$0xff] %v2509
        %2542 = vst [vmem:[%s197 + $0x98] sm:$0xff] %v2510
        %2543 = vst [vmem:[%s197 + $0xa0] sm:$0xff] %v2511
        %2544 = vst [vmem:[%s197 + $0xa8] sm:$0xff] %v2512
        %2545 = vst [vmem:[%s197 + $0xb0] sm:$0xff] %v2513
        %2546 = vst [vmem:[%s197 + $0xb8] sm:$0xff] %v2514
        %2547 = vst [vmem:[%s197 + $0xc0] sm:$0xff] %v2515
        %2548 = vst [vmem:[%s197 + $0xc8] sm:$0xff] %v2516
        %2549 = vst [vmem:[%s197 + $0xd0] sm:$0xff] %v2517
        %2550 = vst [vmem:[%s197 + $0xd8] sm:$0xff] %v2518
        %2551 = vst [vmem:[%s197 + $0xe0] sm:$0xff] %v2519
        %2552 = vst [vmem:[%s197 + $0xe8] sm:$0xff] %v2520
        %2553 = vst [vmem:[%s197 + $0xf0] sm:$0xff] %v2521
        %2554 = vst [vmem:[%s197 + $0xf8] sm:$0xff] %v2522
        %v2555 = vmax.f32 %v2491, %v2493
        %v2556 = vmax.f32 %v2492, %v2494
        %2557 = vst [vmem:[#allocation2] sm:$0xff] %v2555
        %2558 = vst [vmem:[#allocation2 + $0x8] sm:$0xff] %v2556
        %v2559 = vmax.f32 %v2495, %v2497
        %v2560 = vmax.f32 %v2496, %v2498
        %2561 = vst [vmem:[#allocation2 + $0x10] sm:$0xff] %v2559
        %2562 = vst [vmem:[#allocation2 + $0x18] sm:$0xff] %v2560
        %v2563 = vmax.f32 %v2499, %v2501
        %v2564 = vmax.f32 %v2500, %v2502
        %2565 = vst [vmem:[#allocation2 + $0x20] sm:$0xff] %v2563
        %2566 = vst [vmem:[#allocation2 + $0x28] sm:$0xff] %v2564
        %v2567 = vmax.f32 %v2503, %v2505
        %v2568 = vmax.f32 %v2504, %v2506
        %2569 = vst [vmem:[#allocation2 + $0x30] sm:$0xff] %v2567
        %2570 = vst [vmem:[#allocation2 + $0x38] sm:$0xff] %v2568
        %v2571 = vmax.f32 %v2507, %v2509
        %v2572 = vmax.f32 %v2508, %v2510
        %2573 = vst [vmem:[#allocation2 + $0x40] sm:$0xff] %v2571
        %2574 = vst [vmem:[#allocation2 + $0x48] sm:$0xff] %v2572
        %v2575 = vmax.f32 %v2511, %v2513
        %v2576 = vmax.f32 %v2512, %v2514
        %2577 = vst [vmem:[#allocation2 + $0x50] sm:$0xff] %v2575
        %2578 = vst [vmem:[#allocation2 + $0x58] sm:$0xff] %v2576
        %v2579 = vmax.f32 %v2515, %v2517
        %v2580 = vmax.f32 %v2516, %v2518
        %2581 = vst [vmem:[#allocation2 + $0x60] sm:$0xff] %v2579
        %2582 = vst [vmem:[#allocation2 + $0x68] sm:$0xff] %v2580
        %v2583 = vmax.f32 %v2519, %v2521
        %v2584 = vmax.f32 %v2520, %v2522
        %2585 = vst [vmem:[#allocation2 + $0x70] sm:$0xff] %v2583
        %2586 = vst [vmem:[#allocation2 + $0x78] sm:$0xff] %v2584
        %v2587 = vld [vmem:[#allocation2] ss:$2 sm:$0xff]
        %s2588 = scalar_lea.vmem [#allocation2], 16
        %v2589 = vld [vmem:[%s2588] ss:$2 sm:$0xff]
        %s2590 = scalar_lea.vmem [#allocation2], 32
        %v2591 = vld [vmem:[%s2590] ss:$2 sm:$0xff]
        %s2592 = scalar_lea.vmem [#allocation2], 48
        %v2593 = vld [vmem:[%s2592] ss:$2 sm:$0xff]
        %s2594 = scalar_lea.vmem [#allocation2], 64
        %v2595 = vld [vmem:[%s2594] ss:$2 sm:$0xff]
        %s2596 = scalar_lea.vmem [#allocation2], 80
        %v2597 = vld [vmem:[%s2596] ss:$2 sm:$0xff]
        %s2598 = scalar_lea.vmem [#allocation2], 96
        %v2599 = vld [vmem:[%s2598] ss:$2 sm:$0xff]
        %s2600 = scalar_lea.vmem [#allocation2], 112
        %v2601 = vld [vmem:[%s2600] ss:$2 sm:$0xff]
        %s2602 = scalar_lea.vmem [#allocation2], 1
        %v2603 = vld [vmem:[%s2602] ss:$2 sm:$0xff]
        %s2604 = scalar_lea.vmem [#allocation2], 17
        %v2605 = vld [vmem:[%s2604] ss:$2 sm:$0xff]
        %s2606 = scalar_lea.vmem [#allocation2], 33
        %v2607 = vld [vmem:[%s2606] ss:$2 sm:$0xff]
        %s2608 = scalar_lea.vmem [#allocation2], 49
        %v2609 = vld [vmem:[%s2608] ss:$2 sm:$0xff]
        %s2610 = scalar_lea.vmem [#allocation2], 65
        %v2611 = vld [vmem:[%s2610] ss:$2 sm:$0xff]
        %s2612 = scalar_lea.vmem [#allocation2], 81
        %v2613 = vld [vmem:[%s2612] ss:$2 sm:$0xff]
        %s2614 = scalar_lea.vmem [#allocation2], 97
        %v2615 = vld [vmem:[%s2614] ss:$2 sm:$0xff]
        %s2616 = scalar_lea.vmem [#allocation2], 113
        %v2617 = vld [vmem:[%s2616] ss:$2 sm:$0xff]
        %v2618 = vmax.f32 %v2587, %v2603
        %v2619 = vmax.f32 %v2589, %v2605
        %v2620 = vmax.f32 %v2591, %v2607
        %v2621 = vmax.f32 %v2593, %v2609
        %v2622 = vmax.f32 %v2595, %v2611
        %v2623 = vmax.f32 %v2597, %v2613
        %v2624 = vmax.f32 %v2599, %v2615
        %v2625 = vmax.f32 %v2601, %v2617
        %2626 = vst [vmem:[%s204] sm:$0xff] %v2618
        %2627 = vst [vmem:[%s204 + $0x8] sm:$0xff] %v2619
        %2628 = vst [vmem:[%s204 + $0x10] sm:$0xff] %v2620
        %2629 = vst [vmem:[%s204 + $0x18] sm:$0xff] %v2621
        %2630 = vst [vmem:[%s204 + $0x20] sm:$0xff] %v2622
        %2631 = vst [vmem:[%s204 + $0x28] sm:$0xff] %v2623
        %2632 = vst [vmem:[%s204 + $0x30] sm:$0xff] %v2624
        %2633 = vst [vmem:[%s204 + $0x38] sm:$0xff] %v2625
        %s2634 = sand.u32 %s98, 1
        %s2635 = scalar_lea.sflag [#allocation4], %s2634
        %s2636 = sand.u32 %s98, 1
        %s2637 = smul.addr %s2636, 256
        %s2638 = scalar_lea.vmem [#allocation3], %s2637
        %s2639 = sand.u32 %s124, 1
        %s2640 = scalar_lea.sflag [#allocation6], %s2639
        %s2641 = sand.u32 %s124, 1
        %s2642 = smul.addr %s2641, 64
        %s2643 = scalar_lea.vmem [#allocation5], %s2642
        // Predicated region
        $region33: #{encoder_block_forward.3} parent=31 // pred_check
          %p2644 = pneg %p108
        $region34: #{encoder_block_forward.3} parent=31 // pred_check_branch
          %2646 = sbr.rel (%p2644) target = $region36
        $region35: #{encoder_block_forward.3} parent=31 // pred_region
          %s2647 = smul.u32 32, %s22
          %2649 = vsyncadd %s2635, 0
          %s2650 = smul.addr %s2647, 8
          %s2651 = scalar_lea.hbm %s3, %s2650
          %s2652 = sshll.u32 %s2638, 4
          %s2653 = int_to_ptr.vmem [resolvable:$true] %s2652
          %s2654 = sshll.u32 %s2651, 4
          %s2655 = int_to_ptr.hbm [resolvable:$true] %s2654
          %2660 = dma.vmem_to_hbm [thread:$0]  %s2653, 4096, %s2655, %s2635, 128, 128, 8
        $region36: #{encoder_block_forward.3} parent=31 // pred_fallthru
          _
        // Predicated region
        $region37: #{encoder_block_forward.3} parent=31 // pred_check
          %p2661 = pneg %p134
        $region38: #{encoder_block_forward.3} parent=31 // pred_check_branch
          %2663 = sbr.rel (%p2661) target = $region40
        $region39: #{encoder_block_forward.3} parent=31 // pred_region
          %s2664 = smul.u32 8, %s22
          %2666 = vsyncadd %s2640, 0
          %s2667 = smul.addr %s2664, 8
          %s2668 = scalar_lea.hbm %s4, %s2667
          %s2669 = sshll.u32 %s2643, 4
          %s2670 = int_to_ptr.vmem [resolvable:$true] %s2669
          %s2671 = sshll.u32 %s2668, 4
          %s2672 = int_to_ptr.hbm [resolvable:$true] %s2671
          %2677 = dma.vmem_to_hbm [thread:$0]  %s2670, 1024, %s2672, %s2640, 128, 128, 8
        $region40: #{encoder_block_forward.3} parent=31 // pred_fallthru
          _
      $region32: #{encoder_block_forward.3} parent=5 // pred_fallthru
        _
      %p2678 = scmp.le.s32.totalorder 2, %s17
      // Predicated region
      $region41: #{encoder_block_forward.3} parent=5 // pred_check
        %p2679 = pneg %p2678
      $region42: #{encoder_block_forward.3} parent=5 // pred_check_branch
        %2681 = sbr.rel (%p2679) target = $region44
      $region43: #{encoder_block_forward.3} parent=5 // pred_region
        %s2682 = ssub.s32 %s17, 2
        // Predicated region
        $region45: #{encoder_block_forward.3} parent=43 // pred_check
          %p2683 = pneg %p114
        $region46: #{encoder_block_forward.3} parent=43 // pred_check_branch
          %2685 = sbr.rel (%p2683) target = $region48
        $region47: #{encoder_block_forward.3} parent=43 // pred_region
          %s2686 = sand.u32 %s99, 1
          %s2687 = scalar_lea.sflag [#allocation4], %s2686
          %s2688 = sand.u32 %s99, 1
          %s2689 = smul.addr %s2688, 256
          %s2690 = scalar_lea.vmem [#allocation3], %s2689
          %2692 = dma.done %s2687, 4096
        $region48: #{encoder_block_forward.3} parent=43 // pred_fallthru
          _
        // Predicated region
        $region49: #{encoder_block_forward.3} parent=43 // pred_check
          %p2693 = pneg %p140
        $region50: #{encoder_block_forward.3} parent=43 // pred_check_branch
          %2695 = sbr.rel (%p2693) target = $region52
        $region51: #{encoder_block_forward.3} parent=43 // pred_region
          %s2696 = sand.u32 %s125, 1
          %s2697 = scalar_lea.sflag [#allocation6], %s2696
          %s2698 = sand.u32 %s125, 1
          %s2699 = smul.addr %s2698, 64
          %s2700 = scalar_lea.vmem [#allocation5], %s2699
          %2702 = dma.done %s2697, 1024
        $region52: #{encoder_block_forward.3} parent=43 // pred_fallthru
          _
      $region44: #{encoder_block_forward.3} parent=5 // pred_fallthru
        _
    $region6: #{encoder_block_forward.3} parent=1 // loop_footer
      %s21 = sadd.s32 1, %s17
    $region7: #{encoder_block_forward.3} parent=1 // loop_footer_branch
      %16 = sbr.rel target = $region3
    $region8: #{encoder_block_forward.3} parent=1 // loop_exit
      _
    %2703 = vsyncpa [#allocation4], 1
    %s2704 = scalar_lea.sflag [#allocation4], 1
    %2705 = vsyncpa %s2704, 1
    %2706 = vsyncpa [#allocation6], 1
    %s2707 = scalar_lea.sflag [#allocation6], 1
    %2708 = vsyncpa %s2707, 1

</llo_original>
